<compile_context>
chip_gen: v6e
topology: v6e:2x2x1
jax: 0.10.0
libtpu: 0.0.40
codegen_flags: <defaults>
</compile_context>

<pallas_src>
import jax
import jax.numpy as jnp
from jax.experimental import pallas as pl
from jax.experimental.pallas import tpu as pltpu

# ----------------------------- configuration --------------------------------
HIDDEN = 32          # hidden_size
WORD_EMB = 300       # nn.Embedding(ntoken, 300)
ACT_EMB = 64         # nn.Embedding(5, 64)
N_ACTIONS = 5
OH_PAD = 8           # one-hot padded to 8 lanes (extra columns always zero)
VIS_DIM = 2048       # projection_vfeat input dim
NTOKEN = 50
OUT_LANES = 128      # lane-dense packed per-step output width

NEG_BIG = -10000000000.0

# interaction slab (width H) row offsets — 1-row entries on 8-row-aligned slots
R_LIW = 0                         # lang_int W   (3H rows)
R_VIW = 3 * HIDDEN                # vis_int  W   (3H rows)
R_LIB = 6 * HIDDEN                # lang_int b
R_VIB = R_LIB + 8                 # vis_int  b
R_WLVC = R_VIB + 8                # lang_vis_com weight (row vector)
R_BLVC = R_WLVC + 8               # lang_vis_com bias (broadcast to H lanes)
INT_ROWS = R_BLVC + 8             # 224


def _softmax(x, axis):
    m = jnp.max(x, axis=axis, keepdims=True)
    e = jnp.exp(x - m)
    return e / jnp.sum(e, axis=axis, keepdims=True)


def _mask_logits(target, mask):
    return target * mask + (1.0 - mask) * NEG_BIG


# ------------------- precompute kernel: lang LSTM + vfeat proj ---------------
def precompute_kernel(x_ref, wih_ref, rec_ref, vis_ref, wv_ref, bv_ref,
                      enc_ref, visp_ref, xg_sc):
    """Single program.  (a) InstructionEncoder LSTM: input projection for all
    L timesteps in one bf16 MXU call, only the recurrent matmul on the serial
    chain.  (b) projection_vfeat: one bf16 matmul (hoisted out of the rollout
    because the visual feature is fixed)."""
    f32 = jnp.float32
    L, B, D = x_ref.shape
    H = enc_ref.shape[-1]

    # ---- nn.LSTM(300, H) ----
    w_hh = rec_ref[0:H, :]                                     # (H, 4H) f32
    b = rec_ref[H:H + 1, :]                                    # (1, 4H) f32
    xg_sc[...] = (jnp.dot(x_ref[...].reshape(L * B, D), wih_ref[...],
                          preferred_element_type=f32) + b).reshape(L, B, 4 * H)

    def step(t, carry):
        h, c = carry
        gates = xg_sc[t] + jnp.dot(h, w_hh, preferred_element_type=f32)
        i = jax.nn.sigmoid(gates[:, 0 * H:1 * H])
        f = jax.nn.sigmoid(gates[:, 1 * H:2 * H])
        g = jnp.tanh(gates[:, 2 * H:3 * H])
        o = jax.nn.sigmoid(gates[:, 3 * H:4 * H])
        c_new = f * c + i * g
        h_new = o * jnp.tanh(c_new)
        enc_ref[t] = h_new
        return (h_new, c_new)

    jax.lax.fori_loop(0, L, step,
                      (jnp.zeros((B, H), f32), jnp.zeros((B, H), f32)),
                      unroll=True)

    # ---- projection_vfeat (LinearAct(2048, H)) ----
    Bv, V, Dv = vis_ref.shape
    vp = jnp.dot(vis_ref[...].reshape(Bv * V, Dv), wv_ref[...],
                 preferred_element_type=f32) + bv_ref[...]
    visp_ref[...] = vp.reshape(Bv, V, H)


def run_precompute(x_tbd_bf16, lang_wih_bf16, lang_rec, vis_bf16,
                   w_vfeat_bf16, b_vfeat, hidden=HIDDEN):
    L, B, _ = x_tbd_bf16.shape
    V = vis_bf16.shape[1]
    vmem = pl.BlockSpec(memory_space=pltpu.MemorySpace.VMEM)
    return pl.pallas_call(
        precompute_kernel,
        out_shape=(jax.ShapeDtypeStruct((L, B, hidden), jnp.float32),
                   jax.ShapeDtypeStruct((B, V, hidden), jnp.float32)),
        in_specs=[vmem] * 6,
        out_specs=(vmem, vmem),
        scratch_shapes=[pltpu.VMEM((L, B, 4 * hidden), jnp.float32)],
    )(x_tbd_bf16, lang_wih_bf16, lang_rec, vis_bf16, w_vfeat_bf16, b_vfeat)


# --------------------- fused greedy-rollout decoder kernel -------------------
def rollout_kernel(onehot0_ref, insts_ref, mask_ref, visp_ref,
                   lstm_ref, int_ref, pr_ref, out_ref):
    """Single program.  attention_cross runs ONCE (step-invariant); the T
    greedy decode steps run in a fori_loop with h / c / one-hot carried in
    vregs."""
    f32 = jnp.float32
    B, L, H = insts_ref.shape
    V = visp_ref.shape[1]
    NA = pr_ref.shape[1]
    OHP = onehot0_ref.shape[1]
    T = out_ref.shape[0]

    insts = insts_ref[...]                                       # (B, L, H)
    mask = mask_ref[...]                                         # (B, L)
    vis_p = visp_ref[...]                                        # (B, V, H)

    # ---------------- attention_cross (hoisted out of the T loop) ----------
    w_lvc = int_ref[R_WLVC:R_WLVC + 1, :]                        # (1, H)
    b_lvc = int_ref[R_BLVC:R_BLVC + 1, :][:, 0:1]                # (1, 1)
    insts_w = insts * w_lvc
    # sim[b,l,v] = <insts[b,l]*w, vis_p[b,v]> + b ; the transposed orientation
    # is produced by a second tiny einsum so both softmaxes run on the minor
    # axis (this whole block executes once, not per step).
    sim = jnp.einsum('bld,bvd->blv', insts_w, vis_p,
                     preferred_element_type=f32) + b_lvc[:, :, None]
    sim_t = jnp.einsum('bvd,bld->bvl', vis_p, insts_w,
                       preferred_element_type=f32) + b_lvc[:, :, None]
    sim_v = _softmax(sim, axis=-1)                               # over V
    sim_l_t = _softmax(_mask_logits(sim_t, mask[:, None, :]), axis=-1)  # over L

    ltv = jnp.einsum('blv,bvh->blh', sim_v, vis_p, preferred_element_type=f32)
    vtl = jnp.einsum('bvl,blh->bvh', sim_l_t, insts,
                     preferred_element_type=f32)

    def lin3(a, b_, w, bias, rows):
        # LinearAct(3H, H) over [a, b, a*b] as one (rows, 3H) @ (3H, H) matmul.
        cat = jnp.concatenate([a.reshape(rows, H), b_.reshape(rows, H),
                               (a * b_).reshape(rows, H)], axis=-1)
        return jnp.dot(cat, w, preferred_element_type=f32) + bias

    inst_new = lin3(insts, ltv, int_ref[R_LIW:R_LIW + 3 * H, :],
                    int_ref[R_LIB:R_LIB + 1, :], B * L).reshape(B, L, H)
    vis_new = lin3(vis_p, vtl, int_ref[R_VIW:R_VIW + 3 * H, :],
                   int_ref[R_VIB:R_VIB + 1, :], B * V).reshape(B, V, H)

    # ---------------- per-step weights (a_emb folded into W_ih) ------------
    w_xh = lstm_ref[0:OHP + H, :]                                # (8+H, 4H)
    b_xh = lstm_ref[OHP + H:OHP + H + 1, :]                      # (1, 4H)
    pr_w = pr_ref[0:3 * H, :]
    pr_b = pr_ref[3 * H:3 * H + 1, :]

    def step(t, carry):
        h, c, oh = carry                                         # vreg carries
        # act_lstm: LSTMCell(a_emb(it), (h, c)); emb folded -> single matmul.
        xh = jnp.concatenate([oh, h], axis=-1)                   # (B, 8+H)
        gates = jnp.dot(xh, w_xh, preferred_element_type=f32) + b_xh
        i_g = jax.nn.sigmoid(gates[:, 0 * H:1 * H])
        f_g = jax.nn.sigmoid(gates[:, 1 * H:2 * H])
        g_g = jnp.tanh(gates[:, 2 * H:3 * H])
        o_g = jax.nn.sigmoid(gates[:, 3 * H:4 * H])
        c_new = f_g * c + i_g * g_g
        h_act = o_g * jnp.tanh(c_new)

        # attention(h_act, inst_new, insts_mask)
        s_i = _mask_logits(jnp.sum(h_act[:, None, :] * inst_new, axis=-1), mask)
        w_i = _softmax(s_i, axis=-1)
        h_att_inst = jnp.sum(w_i[:, :, None] * inst_new, axis=1)  # (B, H)

        # attention(h_act, vis_new, None)
        s_v = jnp.sum(h_act[:, None, :] * vis_new, axis=-1)
        w_v = _softmax(s_v, axis=-1)
        h_att_vis = jnp.sum(w_v[:, :, None] * vis_new, axis=1)    # (B, H)

        # projection(cat[...]) + log_softmax (dropout = identity in eval)
        feats = jnp.concatenate([h_att_inst, h_att_vis, h_act], axis=-1)
        logit = jnp.dot(feats, pr_w, preferred_element_type=f32) + pr_b
        m = jnp.max(logit, axis=-1, keepdims=True)
        lse = m + jnp.log(jnp.sum(jnp.exp(logit - m), axis=-1, keepdims=True))
        logprobs = logit - lse

        # greedy argmax (first-occurrence tie-break) -> padded one-hot
        idx = jax.lax.broadcasted_iota(jnp.int32, (B, OHP), 1)
        it_next = jnp.min(
            jnp.where(logprobs == jnp.max(logprobs, axis=-1, keepdims=True),
                      idx[:, :NA], NA), axis=-1, keepdims=True)
        oh_next = (idx == it_next).astype(f32)                    # (B, 8)

        # lane-dense packed row: [logprobs | logit | h | c | onehot_next | pad]
        pad = jnp.zeros((B, OUT_LANES - (2 * NA + 2 * H + OHP)), f32)
        out_ref[t] = jnp.concatenate(
            [logprobs, logit, h_act, c_new, oh_next, pad], axis=-1)
        return (h_act, c_new, oh_next)

    jax.lax.fori_loop(
        0, T, step,
        (jnp.zeros((B, H), f32), jnp.zeros((B, H), f32), onehot0_ref[...]),
        unroll=True)


def greedy_rollout(onehot0, insts_enc, insts_mask, vis_proj,
                   lstm_fused, int_slab, pr_slab, n_steps):
    """T decode steps of ActionDecoder.func, fused in one single-program
    pallas_call (no grid; state lives in fori_loop carries)."""
    B = insts_enc.shape[0]
    vmem = pl.BlockSpec(memory_space=pltpu.MemorySpace.VMEM)
    return pl.pallas_call(
        rollout_kernel,
        out_shape=jax.ShapeDtypeStruct((n_steps, B, OUT_LANES), jnp.float32),
        in_specs=[vmem] * 7,
        out_specs=vmem,
    )(onehot0, insts_enc, insts_mask, vis_proj, lstm_fused, int_slab, pr_slab)


# ------------------------------- parameters ----------------------------------
def init_params(key, hidden=HIDDEN):
    keys = iter(jax.random.split(key, 32))

    def nrm(shape, scale=0.05):
        return scale * jax.random.normal(next(keys), shape, dtype=jnp.float32)

    H = hidden
    # Weights stored input-major (transpose of PyTorch's nn.Linear/LSTM);
    # LSTM bias rows correspond to bias_ih + bias_hh when porting real weights.
    return {
        "w_emb": nrm((NTOKEN, WORD_EMB)),
        "lang_w_ih": nrm((WORD_EMB, 4 * H)),
        "lang_w_hh": nrm((H, 4 * H)),
        "lang_b": nrm((1, 4 * H)),
        "a_emb": nrm((N_ACTIONS, ACT_EMB)),
        "act_w_ih": nrm((ACT_EMB, 4 * H)),
        "act_w_hh": nrm((H, 4 * H)),
        "act_b": nrm((1, 4 * H)),
        "lang_int_w": nrm((3 * H, H)), "lang_int_b": nrm((1, H)),
        "vis_int_w": nrm((3 * H, H)), "vis_int_b": nrm((1, H)),
        "lang_vis_com_w": nrm((1, H)), "lang_vis_com_b": nrm((1, 1)),
        "proj_w": nrm((3 * H, N_ACTIONS)), "proj_b": nrm((1, N_ACTIONS)),
        "vfeat_w": nrm((VIS_DIM, H)), "vfeat_b": nrm((1, H)),
    }


def pack_params(p, hidden=HIDDEN):
    """Build the device-ready slabs (bf16 pre-casts and a_emb folding)."""
    H = hidden
    # language LSTM: bf16 input projection (halves DMA bytes), f32 recurrence.
    lang_wih_bf16 = p["lang_w_ih"].astype(jnp.bfloat16)
    lang_rec = jnp.concatenate([p["lang_w_hh"], p["lang_b"]], axis=0)  # (H+1,4H)

    # act LSTMCell with a_emb folded into the input projection:
    #   a_emb(it) @ W_ih == onehot(it) @ (a_emb @ W_ih)   (eval: dropout = id)
    a_fused = jnp.dot(p["a_emb"], p["act_w_ih"])                      # (5, 4H)
    a_fused = jnp.concatenate(
        [a_fused, jnp.zeros((OH_PAD - N_ACTIONS, 4 * H), jnp.float32)], axis=0)
    lstm_fused = jnp.concatenate([a_fused, p["act_w_hh"], p["act_b"]], axis=0)

    # interaction / small-weight slab (width H)
    intw = jnp.zeros((INT_ROWS, H), jnp.float32)
    intw = intw.at[R_LIW:R_LIW + 3 * H].set(p["lang_int_w"])
    intw = intw.at[R_VIW:R_VIW + 3 * H].set(p["vis_int_w"])
    intw = intw.at[R_LIB:R_LIB + 1].set(p["lang_int_b"])
    intw = intw.at[R_VIB:R_VIB + 1].set(p["vis_int_b"])
    intw = intw.at[R_WLVC:R_WLVC + 1].set(p["lang_vis_com_w"])
    intw = intw.at[R_BLVC:R_BLVC + 1].set(
        jnp.broadcast_to(p["lang_vis_com_b"], (1, H)))

    pr = jnp.concatenate([p["proj_w"], p["proj_b"]], axis=0)          # (3H+1, 5)

    return {
        "lang_wih_bf16": lang_wih_bf16, "lang_rec": lang_rec,
        "lstm_fused": lstm_fused, "int_slab": intw, "pr_slab": pr,
        "w_vfeat_bf16": p["vfeat_w"].astype(jnp.bfloat16),
        "b_vfeat": p["vfeat_b"],
    }


# ---------------------------------- main --------------------------------------
if __name__ == "__main__":
    B, L, H = 2, 8, HIDDEN
    Hs = Ws = 2                       # visual grid -> V = 4 locations
    T = 3                             # rollout steps (demo; maxLen=150 upstream)

    root = jax.random.PRNGKey(0)
    kp, k1, k2, k3 = jax.random.split(root, 4)
    params = init_params(kp)
    pk = pack_params(params)

    insts = jax.random.randint(k1, (B, L), 0, NTOKEN, dtype=jnp.int32)
    insts_len = jnp.array([L, 5], dtype=jnp.int32)
    vis_feat = jax.random.normal(k2, (B, Hs, Ws, VIS_DIM), dtype=jnp.float32)
    it0 = jax.random.randint(k3, (B,), 0, N_ACTIONS, dtype=jnp.int32)

    # Glue (XLA): embedding gather (pre-cast bf16), mask, visual flatten.
    x_tbd = jnp.transpose(params["w_emb"][insts], (1, 0, 2)).astype(jnp.bfloat16)
    insts_mask = (jnp.arange(L)[None, :]
                  < insts_len[:, None]).astype(jnp.float32)
    vis_flat = vis_feat.reshape(B, -1, VIS_DIM).astype(jnp.bfloat16)

    # Precompute kernel: InstructionEncoder LSTM + projection_vfeat.
    enc_lbh, vis_proj = run_precompute(x_tbd, pk["lang_wih_bf16"],
                                       pk["lang_rec"], vis_flat,
                                       pk["w_vfeat_bf16"], pk["b_vfeat"])
    insts_enc = jnp.transpose(enc_lbh, (1, 0, 2))        # (B, L, H)

    # Fused greedy rollout (eval mode).  vis_feat is fixed because the
    # simulator that would refresh it per step is unavailable.
    onehot0 = jax.nn.one_hot(it0, OH_PAD, dtype=jnp.float32)
    packed = greedy_rollout(onehot0, insts_enc, insts_mask, vis_proj,
                            pk["lstm_fused"], pk["int_slab"], pk["pr_slab"], T)
    jax.block_until_ready((insts_enc, vis_proj, packed))

    NA = N_ACTIONS
    logprobs_seq = packed[:, :, 0:NA]
    logit_seq = packed[:, :, NA:2 * NA]
    h_seq = packed[:, :, 2 * NA:2 * NA + H]
    c_seq = packed[:, :, 2 * NA + H:2 * NA + 2 * H]
    act_seq = jnp.argmax(packed[:, :, 2 * NA + 2 * H:2 * NA + 2 * H + NA],
                         axis=-1)

    logprobs, logit = logprobs_seq[-1], logit_seq[-1]
    h_last, c_last = h_seq[-1], c_seq[-1]
    assert logprobs.shape == (B, NA) and logit.shape == (B, NA)
    assert h_last.shape == (B, H) and c_last.shape == (B, H)
    assert act_seq.shape == (T, B)
    assert bool(jnp.all(jnp.isfinite(logprobs)))
    assert bool(jnp.allclose(jnp.exp(logprobs).sum(-1), 1.0, atol=1e-3))
    print("KERNEL_OK")
</pallas_src>

<mosaic_0001>
module attributes {stable_mosaic.version = 11 : i64} {
  func.func @precompute_kernel(%arg0: memref<8x2x300xbf16, #tpu.memory_space<vmem>>, %arg1: memref<300x128xbf16, #tpu.memory_space<vmem>>, %arg2: memref<33x128xf32, #tpu.memory_space<vmem>>, %arg3: memref<2x4x2048xbf16, #tpu.memory_space<vmem>>, %arg4: memref<2048x32xbf16, #tpu.memory_space<vmem>>, %arg5: memref<1x32xf32, #tpu.memory_space<vmem>>, %arg6: memref<8x2x32xf32, #tpu.memory_space<vmem>>, %arg7: memref<2x4x32xf32, #tpu.memory_space<vmem>>, %arg8: memref<8x2x128xf32, #tpu.memory_space<vmem>>) attributes {dimension_semantics = [], scalar_prefetch = 0 : i64, scratch_operands = 1 : i64, tpu.core_type = #tpu.core_type<tc>} {
    %c0 = arith.constant 0 : index
    %c0_0 = arith.constant 0 : index
    %0 = vector.load %arg2[%c0, %c0_0] : memref<33x128xf32, #tpu.memory_space<vmem>>, vector<32x128xf32>
    %c32 = arith.constant 32 : index
    %c0_1 = arith.constant 0 : index
    %1 = vector.load %arg2[%c32, %c0_1] : memref<33x128xf32, #tpu.memory_space<vmem>>, vector<1x128xf32>
    %c0_2 = arith.constant 0 : index
    %c0_3 = arith.constant 0 : index
    %c0_4 = arith.constant 0 : index
    %2 = vector.load %arg0[%c0_2, %c0_3, %c0_4] : memref<8x2x300xbf16, #tpu.memory_space<vmem>>, vector<8x2x300xbf16>
    %3 = vector.shape_cast %2 : vector<8x2x300xbf16> to vector<16x300xbf16>
    %c0_5 = arith.constant 0 : index
    %c0_6 = arith.constant 0 : index
    %4 = vector.load %arg1[%c0_5, %c0_6] : memref<300x128xbf16, #tpu.memory_space<vmem>>, vector<300x128xbf16>
    %cst = arith.constant dense<0.000000e+00> : vector<16x128xf32>
    %5 = tpu.matmul %3, %4, %cst {dimension_numbers = #tpu.dot_dimension_numbers<[1], [0], [0], [1], [0, 0, 1, 1], [], []>} : vector<16x300xbf16>, vector<300x128xbf16>, vector<16x128xf32> -> vector<16x128xf32>
    %6 = vector.broadcast %1 : vector<1x128xf32> to vector<16x128xf32>
    %7 = arith.addf %5, %6 : vector<16x128xf32>
    %8 = vector.shape_cast %7 : vector<16x128xf32> to vector<8x2x128xf32>
    %c0_7 = arith.constant 0 : index
    %c0_8 = arith.constant 0 : index
    %c0_9 = arith.constant 0 : index
    %9 = vector.load %arg8[%c0_7, %c0_8, %c0_9] : memref<8x2x128xf32, #tpu.memory_space<vmem>>, vector<8x2x128xf32>
    tpu.vector_store %arg8[%c0_7, %c0_8, %c0_9], %8 {strides = array<i32>} : memref<8x2x128xf32, #tpu.memory_space<vmem>>, vector<8x2x128xf32>,
    %cst_10 = arith.constant 0.000000e+00 : f32
    %10 = vector.broadcast %cst_10 : f32 to vector<2x32xf32>
    %cst_11 = arith.constant 0.000000e+00 : f32
    %11 = vector.broadcast %cst_11 : f32 to vector<2x32xf32>
    %c0_i32 = arith.constant 0 : i32
    %12 = arith.index_cast %c0_i32 : i32 to index
    %c0_12 = arith.constant 0 : index
    %c0_13 = arith.constant 0 : index
    %13 = vector.load %arg8[%12, %c0_12, %c0_13] : memref<8x2x128xf32, #tpu.memory_space<vmem>>, vector<1x2x128xf32>
    %14 = vector.shape_cast %13 : vector<1x2x128xf32> to vector<2x128xf32>
    %cst_14 = arith.constant dense<0.000000e+00> : vector<2x128xf32>
    %15 = tpu.matmul %10, %0, %cst_14 {dimension_numbers = #tpu.dot_dimension_numbers<[1], [0], [0], [1], [0, 0, 1, 1], [], []>} : vector<2x32xf32>, vector<32x128xf32>, vector<2x128xf32> -> vector<2x128xf32>
    %16 = arith.addf %14, %15 : vector<2x128xf32>
    %17 = vector.extract_strided_slice %16 {offsets = [0, 0], sizes = [2, 32], strides = [1, 1]} : vector<2x128xf32> to vector<2x32xf32>
    %18 = arith.negf %17 : vector<2x32xf32>
    %19 = math.exp %18 : vector<2x32xf32>
    %cst_15 = arith.constant 1.000000e+00 : f32
    %20 = vector.broadcast %cst_15 : f32 to vector<2x32xf32>
    %21 = arith.addf %20, %19 : vector<2x32xf32>
    %22 = arith.divf %20, %21 : vector<2x32xf32>
    %23 = vector.extract_strided_slice %16 {offsets = [0, 32], sizes = [2, 32], strides = [1, 1]} : vector<2x128xf32> to vector<2x32xf32>
    %24 = arith.negf %23 : vector<2x32xf32>
    %25 = math.exp %24 : vector<2x32xf32>
    %cst_16 = arith.constant 1.000000e+00 : f32
    %26 = vector.broadcast %cst_16 : f32 to vector<2x32xf32>
    %27 = arith.addf %26, %25 : vector<2x32xf32>
    %28 = arith.divf %26, %27 : vector<2x32xf32>
    %29 = vector.extract_strided_slice %16 {offsets = [0, 64], sizes = [2, 32], strides = [1, 1]} : vector<2x128xf32> to vector<2x32xf32>
    %30 = math.tanh %29 : vector<2x32xf32>
    %31 = vector.extract_strided_slice %16 {offsets = [0, 96], sizes = [2, 32], strides = [1, 1]} : vector<2x128xf32> to vector<2x32xf32>
    %32 = arith.negf %31 : vector<2x32xf32>
    %33 = math.exp %32 : vector<2x32xf32>
    %cst_17 = arith.constant 1.000000e+00 : f32
    %34 = vector.broadcast %cst_17 : f32 to vector<2x32xf32>
    %35 = arith.addf %34, %33 : vector<2x32xf32>
    %36 = arith.divf %34, %35 : vector<2x32xf32>
    %37 = arith.mulf %28, %11 : vector<2x32xf32>
    %38 = arith.mulf %22, %30 : vector<2x32xf32>
    %39 = arith.addf %37, %38 : vector<2x32xf32>
    %40 = math.tanh %39 : vector<2x32xf32>
    %41 = arith.mulf %36, %40 : vector<2x32xf32>
    %42 = arith.index_cast %c0_i32 : i32 to index
    %c0_18 = arith.constant 0 : index
    %c0_19 = arith.constant 0 : index
    %43 = vector.load %arg6[%42, %c0_18, %c0_19] : memref<8x2x32xf32, #tpu.memory_space<vmem>>, vector<1x2x32xf32>
    %44 = vector.shape_cast %43 : vector<1x2x32xf32> to vector<2x32xf32>
    %45 = vector.shape_cast %41 : vector<2x32xf32> to vector<1x2x32xf32>
    tpu.vector_store %arg6[%42, %c0_18, %c0_19], %45 {strides = array<i32>} : memref<8x2x32xf32, #tpu.memory_space<vmem>>, vector<1x2x32xf32>,
    %c1_i32 = arith.constant 1 : i32
    %46 = arith.index_cast %c1_i32 : i32 to index
    %c0_20 = arith.constant 0 : index
    %c0_21 = arith.constant 0 : index
    %47 = vector.load %arg8[%46, %c0_20, %c0_21] : memref<8x2x128xf32, #tpu.memory_space<vmem>>, vector<1x2x128xf32>
    %48 = vector.shape_cast %47 : vector<1x2x128xf32> to vector<2x128xf32>
    %cst_22 = arith.constant dense<0.000000e+00> : vector<2x128xf32>
    %49 = tpu.matmul %41, %0, %cst_22 {dimension_numbers = #tpu.dot_dimension_numbers<[1], [0], [0], [1], [0, 0, 1, 1], [], []>} : vector<2x32xf32>, vector<32x128xf32>, vector<2x128xf32> -> vector<2x128xf32>
    %50 = arith.addf %48, %49 : vector<2x128xf32>
    %51 = vector.extract_strided_slice %50 {offsets = [0, 0], sizes = [2, 32], strides = [1, 1]} : vector<2x128xf32> to vector<2x32xf32>
    %52 = arith.negf %51 : vector<2x32xf32>
    %53 = math.exp %52 : vector<2x32xf32>
    %cst_23 = arith.constant 1.000000e+00 : f32
    %54 = vector.broadcast %cst_23 : f32 to vector<2x32xf32>
    %55 = arith.addf %54, %53 : vector<2x32xf32>
    %56 = arith.divf %54, %55 : vector<2x32xf32>
    %57 = vector.extract_strided_slice %50 {offsets = [0, 32], sizes = [2, 32], strides = [1, 1]} : vector<2x128xf32> to vector<2x32xf32>
    %58 = arith.negf %57 : vector<2x32xf32>
    %59 = math.exp %58 : vector<2x32xf32>
    %cst_24 = arith.constant 1.000000e+00 : f32
    %60 = vector.broadcast %cst_24 : f32 to vector<2x32xf32>
    %61 = arith.addf %60, %59 : vector<2x32xf32>
    %62 = arith.divf %60, %61 : vector<2x32xf32>
    %63 = vector.extract_strided_slice %50 {offsets = [0, 64], sizes = [2, 32], strides = [1, 1]} : vector<2x128xf32> to vector<2x32xf32>
    %64 = math.tanh %63 : vector<2x32xf32>
    %65 = vector.extract_strided_slice %50 {offsets = [0, 96], sizes = [2, 32], strides = [1, 1]} : vector<2x128xf32> to vector<2x32xf32>
    %66 = arith.negf %65 : vector<2x32xf32>
    %67 = math.exp %66 : vector<2x32xf32>
    %cst_25 = arith.constant 1.000000e+00 : f32
    %68 = vector.broadcast %cst_25 : f32 to vector<2x32xf32>
    %69 = arith.addf %68, %67 : vector<2x32xf32>
    %70 = arith.divf %68, %69 : vector<2x32xf32>
    %71 = arith.mulf %62, %39 : vector<2x32xf32>
    %72 = arith.mulf %56, %64 : vector<2x32xf32>
    %73 = arith.addf %71, %72 : vector<2x32xf32>
    %74 = math.tanh %73 : vector<2x32xf32>
    %75 = arith.mulf %70, %74 : vector<2x32xf32>
    %76 = arith.index_cast %c1_i32 : i32 to index
    %c0_26 = arith.constant 0 : index
    %c0_27 = arith.constant 0 : index
    %77 = vector.load %arg6[%76, %c0_26, %c0_27] : memref<8x2x32xf32, #tpu.memory_space<vmem>>, vector<1x2x32xf32>
    %78 = vector.shape_cast %77 : vector<1x2x32xf32> to vector<2x32xf32>
    %79 = vector.shape_cast %75 : vector<2x32xf32> to vector<1x2x32xf32>
    tpu.vector_store %arg6[%76, %c0_26, %c0_27], %79 {strides = array<i32>} : memref<8x2x32xf32, #tpu.memory_space<vmem>>, vector<1x2x32xf32>,
    %c2_i32 = arith.constant 2 : i32
    %80 = arith.index_cast %c2_i32 : i32 to index
    %c0_28 = arith.constant 0 : index
    %c0_29 = arith.constant 0 : index
    %81 = vector.load %arg8[%80, %c0_28, %c0_29] : memref<8x2x128xf32, #tpu.memory_space<vmem>>, vector<1x2x128xf32>
    %82 = vector.shape_cast %81 : vector<1x2x128xf32> to vector<2x128xf32>
    %cst_30 = arith.constant dense<0.000000e+00> : vector<2x128xf32>
    %83 = tpu.matmul %75, %0, %cst_30 {dimension_numbers = #tpu.dot_dimension_numbers<[1], [0], [0], [1], [0, 0, 1, 1], [], []>} : vector<2x32xf32>, vector<32x128xf32>, vector<2x128xf32> -> vector<2x128xf32>
    %84 = arith.addf %82, %83 : vector<2x128xf32>
    %85 = vector.extract_strided_slice %84 {offsets = [0, 0], sizes = [2, 32], strides = [1, 1]} : vector<2x128xf32> to vector<2x32xf32>
    %86 = arith.negf %85 : vector<2x32xf32>
    %87 = math.exp %86 : vector<2x32xf32>
    %cst_31 = arith.constant 1.000000e+00 : f32
    %88 = vector.broadcast %cst_31 : f32 to vector<2x32xf32>
    %89 = arith.addf %88, %87 : vector<2x32xf32>
    %90 = arith.divf %88, %89 : vector<2x32xf32>
    %91 = vector.extract_strided_slice %84 {offsets = [0, 32], sizes = [2, 32], strides = [1, 1]} : vector<2x128xf32> to vector<2x32xf32>
    %92 = arith.negf %91 : vector<2x32xf32>
    %93 = math.exp %92 : vector<2x32xf32>
    %cst_32 = arith.constant 1.000000e+00 : f32
    %94 = vector.broadcast %cst_32 : f32 to vector<2x32xf32>
    %95 = arith.addf %94, %93 : vector<2x32xf32>
    %96 = arith.divf %94, %95 : vector<2x32xf32>
    %97 = vector.extract_strided_slice %84 {offsets = [0, 64], sizes = [2, 32], strides = [1, 1]} : vector<2x128xf32> to vector<2x32xf32>
    %98 = math.tanh %97 : vector<2x32xf32>
    %99 = vector.extract_strided_slice %84 {offsets = [0, 96], sizes = [2, 32], strides = [1, 1]} : vector<2x128xf32> to vector<2x32xf32>
    %100 = arith.negf %99 : vector<2x32xf32>
    %101 = math.exp %100 : vector<2x32xf32>
    %cst_33 = arith.constant 1.000000e+00 : f32
    %102 = vector.broadcast %cst_33 : f32 to vector<2x32xf32>
    %103 = arith.addf %102, %101 : vector<2x32xf32>
    %104 = arith.divf %102, %103 : vector<2x32xf32>
    %105 = arith.mulf %96, %73 : vector<2x32xf32>
    %106 = arith.mulf %90, %98 : vector<2x32xf32>
    %107 = arith.addf %105, %106 : vector<2x32xf32>
    %108 = math.tanh %107 : vector<2x32xf32>
    %109 = arith.mulf %104, %108 : vector<2x32xf32>
    %110 = arith.index_cast %c2_i32 : i32 to index
    %c0_34 = arith.constant 0 : index
    %c0_35 = arith.constant 0 : index
    %111 = vector.load %arg6[%110, %c0_34, %c0_35] : memref<8x2x32xf32, #tpu.memory_space<vmem>>, vector<1x2x32xf32>
    %112 = vector.shape_cast %111 : vector<1x2x32xf32> to vector<2x32xf32>
    %113 = vector.shape_cast %109 : vector<2x32xf32> to vector<1x2x32xf32>
    tpu.vector_store %arg6[%110, %c0_34, %c0_35], %113 {strides = array<i32>} : memref<8x2x32xf32, #tpu.memory_space<vmem>>, vector<1x2x32xf32>,
    %c3_i32 = arith.constant 3 : i32
    %114 = arith.index_cast %c3_i32 : i32 to index
    %c0_36 = arith.constant 0 : index
    %c0_37 = arith.constant 0 : index
    %115 = vector.load %arg8[%114, %c0_36, %c0_37] : memref<8x2x128xf32, #tpu.memory_space<vmem>>, vector<1x2x128xf32>
    %116 = vector.shape_cast %115 : vector<1x2x128xf32> to vector<2x128xf32>
    %cst_38 = arith.constant dense<0.000000e+00> : vector<2x128xf32>
    %117 = tpu.matmul %109, %0, %cst_38 {dimension_numbers = #tpu.dot_dimension_numbers<[1], [0], [0], [1], [0, 0, 1, 1], [], []>} : vector<2x32xf32>, vector<32x128xf32>, vector<2x128xf32> -> vector<2x128xf32>
    %118 = arith.addf %116, %117 : vector<2x128xf32>
    %119 = vector.extract_strided_slice %118 {offsets = [0, 0], sizes = [2, 32], strides = [1, 1]} : vector<2x128xf32> to vector<2x32xf32>
    %120 = arith.negf %119 : vector<2x32xf32>
    %121 = math.exp %120 : vector<2x32xf32>
    %cst_39 = arith.constant 1.000000e+00 : f32
    %122 = vector.broadcast %cst_39 : f32 to vector<2x32xf32>
    %123 = arith.addf %122, %121 : vector<2x32xf32>
    %124 = arith.divf %122, %123 : vector<2x32xf32>
    %125 = vector.extract_strided_slice %118 {offsets = [0, 32], sizes = [2, 32], strides = [1, 1]} : vector<2x128xf32> to vector<2x32xf32>
    %126 = arith.negf %125 : vector<2x32xf32>
    %127 = math.exp %126 : vector<2x32xf32>
    %cst_40 = arith.constant 1.000000e+00 : f32
    %128 = vector.broadcast %cst_40 : f32 to vector<2x32xf32>
    %129 = arith.addf %128, %127 : vector<2x32xf32>
    %130 = arith.divf %128, %129 : vector<2x32xf32>
    %131 = vector.extract_strided_slice %118 {offsets = [0, 64], sizes = [2, 32], strides = [1, 1]} : vector<2x128xf32> to vector<2x32xf32>
    %132 = math.tanh %131 : vector<2x32xf32>
    %133 = vector.extract_strided_slice %118 {offsets = [0, 96], sizes = [2, 32], strides = [1, 1]} : vector<2x128xf32> to vector<2x32xf32>
    %134 = arith.negf %133 : vector<2x32xf32>
    %135 = math.exp %134 : vector<2x32xf32>
    %cst_41 = arith.constant 1.000000e+00 : f32
    %136 = vector.broadcast %cst_41 : f32 to vector<2x32xf32>
    %137 = arith.addf %136, %135 : vector<2x32xf32>
    %138 = arith.divf %136, %137 : vector<2x32xf32>
    %139 = arith.mulf %130, %107 : vector<2x32xf32>
    %140 = arith.mulf %124, %132 : vector<2x32xf32>
    %141 = arith.addf %139, %140 : vector<2x32xf32>
    %142 = math.tanh %141 : vector<2x32xf32>
    %143 = arith.mulf %138, %142 : vector<2x32xf32>
    %144 = arith.index_cast %c3_i32 : i32 to index
    %c0_42 = arith.constant 0 : index
    %c0_43 = arith.constant 0 : index
    %145 = vector.load %arg6[%144, %c0_42, %c0_43] : memref<8x2x32xf32, #tpu.memory_space<vmem>>, vector<1x2x32xf32>
    %146 = vector.shape_cast %145 : vector<1x2x32xf32> to vector<2x32xf32>
    %147 = vector.shape_cast %143 : vector<2x32xf32> to vector<1x2x32xf32>
    tpu.vector_store %arg6[%144, %c0_42, %c0_43], %147 {strides = array<i32>} : memref<8x2x32xf32, #tpu.memory_space<vmem>>, vector<1x2x32xf32>,
    %c4_i32 = arith.constant 4 : i32
    %148 = arith.index_cast %c4_i32 : i32 to index
    %c0_44 = arith.constant 0 : index
    %c0_45 = arith.constant 0 : index
    %149 = vector.load %arg8[%148, %c0_44, %c0_45] : memref<8x2x128xf32, #tpu.memory_space<vmem>>, vector<1x2x128xf32>
    %150 = vector.shape_cast %149 : vector<1x2x128xf32> to vector<2x128xf32>
    %cst_46 = arith.constant dense<0.000000e+00> : vector<2x128xf32>
    %151 = tpu.matmul %143, %0, %cst_46 {dimension_numbers = #tpu.dot_dimension_numbers<[1], [0], [0], [1], [0, 0, 1, 1], [], []>} : vector<2x32xf32>, vector<32x128xf32>, vector<2x128xf32> -> vector<2x128xf32>
    %152 = arith.addf %150, %151 : vector<2x128xf32>
    %153 = vector.extract_strided_slice %152 {offsets = [0, 0], sizes = [2, 32], strides = [1, 1]} : vector<2x128xf32> to vector<2x32xf32>
    %154 = arith.negf %153 : vector<2x32xf32>
    %155 = math.exp %154 : vector<2x32xf32>
    %cst_47 = arith.constant 1.000000e+00 : f32
    %156 = vector.broadcast %cst_47 : f32 to vector<2x32xf32>
    %157 = arith.addf %156, %155 : vector<2x32xf32>
    %158 = arith.divf %156, %157 : vector<2x32xf32>
    %159 = vector.extract_strided_slice %152 {offsets = [0, 32], sizes = [2, 32], strides = [1, 1]} : vector<2x128xf32> to vector<2x32xf32>
    %160 = arith.negf %159 : vector<2x32xf32>
    %161 = math.exp %160 : vector<2x32xf32>
    %cst_48 = arith.constant 1.000000e+00 : f32
    %162 = vector.broadcast %cst_48 : f32 to vector<2x32xf32>
    %163 = arith.addf %162, %161 : vector<2x32xf32>
    %164 = arith.divf %162, %163 : vector<2x32xf32>
    %165 = vector.extract_strided_slice %152 {offsets = [0, 64], sizes = [2, 32], strides = [1, 1]} : vector<2x128xf32> to vector<2x32xf32>
    %166 = math.tanh %165 : vector<2x32xf32>
    %167 = vector.extract_strided_slice %152 {offsets = [0, 96], sizes = [2, 32], strides = [1, 1]} : vector<2x128xf32> to vector<2x32xf32>
    %168 = arith.negf %167 : vector<2x32xf32>
    %169 = math.exp %168 : vector<2x32xf32>
    %cst_49 = arith.constant 1.000000e+00 : f32
    %170 = vector.broadcast %cst_49 : f32 to vector<2x32xf32>
    %171 = arith.addf %170, %169 : vector<2x32xf32>
    %172 = arith.divf %170, %171 : vector<2x32xf32>
    %173 = arith.mulf %164, %141 : vector<2x32xf32>
    %174 = arith.mulf %158, %166 : vector<2x32xf32>
    %175 = arith.addf %173, %174 : vector<2x32xf32>
    %176 = math.tanh %175 : vector<2x32xf32>
    %177 = arith.mulf %172, %176 : vector<2x32xf32>
    %178 = arith.index_cast %c4_i32 : i32 to index
    %c0_50 = arith.constant 0 : index
    %c0_51 = arith.constant 0 : index
    %179 = vector.load %arg6[%178, %c0_50, %c0_51] : memref<8x2x32xf32, #tpu.memory_space<vmem>>, vector<1x2x32xf32>
    %180 = vector.shape_cast %179 : vector<1x2x32xf32> to vector<2x32xf32>
    %181 = vector.shape_cast %177 : vector<2x32xf32> to vector<1x2x32xf32>
    tpu.vector_store %arg6[%178, %c0_50, %c0_51], %181 {strides = array<i32>} : memref<8x2x32xf32, #tpu.memory_space<vmem>>, vector<1x2x32xf32>,
    %c5_i32 = arith.constant 5 : i32
    %182 = arith.index_cast %c5_i32 : i32 to index
    %c0_52 = arith.constant 0 : index
    %c0_53 = arith.constant 0 : index
    %183 = vector.load %arg8[%182, %c0_52, %c0_53] : memref<8x2x128xf32, #tpu.memory_space<vmem>>, vector<1x2x128xf32>
    %184 = vector.shape_cast %183 : vector<1x2x128xf32> to vector<2x128xf32>
    %cst_54 = arith.constant dense<0.000000e+00> : vector<2x128xf32>
    %185 = tpu.matmul %177, %0, %cst_54 {dimension_numbers = #tpu.dot_dimension_numbers<[1], [0], [0], [1], [0, 0, 1, 1], [], []>} : vector<2x32xf32>, vector<32x128xf32>, vector<2x128xf32> -> vector<2x128xf32>
    %186 = arith.addf %184, %185 : vector<2x128xf32>
    %187 = vector.extract_strided_slice %186 {offsets = [0, 0], sizes = [2, 32], strides = [1, 1]} : vector<2x128xf32> to vector<2x32xf32>
    %188 = arith.negf %187 : vector<2x32xf32>
    %189 = math.exp %188 : vector<2x32xf32>
    %cst_55 = arith.constant 1.000000e+00 : f32
    %190 = vector.broadcast %cst_55 : f32 to vector<2x32xf32>
    %191 = arith.addf %190, %189 : vector<2x32xf32>
    %192 = arith.divf %190, %191 : vector<2x32xf32>
    %193 = vector.extract_strided_slice %186 {offsets = [0, 32], sizes = [2, 32], strides = [1, 1]} : vector<2x128xf32> to vector<2x32xf32>
    %194 = arith.negf %193 : vector<2x32xf32>
    %195 = math.exp %194 : vector<2x32xf32>
    %cst_56 = arith.constant 1.000000e+00 : f32
    %196 = vector.broadcast %cst_56 : f32 to vector<2x32xf32>
    %197 = arith.addf %196, %195 : vector<2x32xf32>
    %198 = arith.divf %196, %197 : vector<2x32xf32>
    %199 = vector.extract_strided_slice %186 {offsets = [0, 64], sizes = [2, 32], strides = [1, 1]} : vector<2x128xf32> to vector<2x32xf32>
    %200 = math.tanh %199 : vector<2x32xf32>
    %201 = vector.extract_strided_slice %186 {offsets = [0, 96], sizes = [2, 32], strides = [1, 1]} : vector<2x128xf32> to vector<2x32xf32>
    %202 = arith.negf %201 : vector<2x32xf32>
    %203 = math.exp %202 : vector<2x32xf32>
    %cst_57 = arith.constant 1.000000e+00 : f32
    %204 = vector.broadcast %cst_57 : f32 to vector<2x32xf32>
    %205 = arith.addf %204, %203 : vector<2x32xf32>
    %206 = arith.divf %204, %205 : vector<2x32xf32>
    %207 = arith.mulf %198, %175 : vector<2x32xf32>
    %208 = arith.mulf %192, %200 : vector<2x32xf32>
    %209 = arith.addf %207, %208 : vector<2x32xf32>
    %210 = math.tanh %209 : vector<2x32xf32>
    %211 = arith.mulf %206, %210 : vector<2x32xf32>
    %212 = arith.index_cast %c5_i32 : i32 to index
    %c0_58 = arith.constant 0 : index
    %c0_59 = arith.constant 0 : index
    %213 = vector.load %arg6[%212, %c0_58, %c0_59] : memref<8x2x32xf32, #tpu.memory_space<vmem>>, vector<1x2x32xf32>
    %214 = vector.shape_cast %213 : vector<1x2x32xf32> to vector<2x32xf32>
    %215 = vector.shape_cast %211 : vector<2x32xf32> to vector<1x2x32xf32>
    tpu.vector_store %arg6[%212, %c0_58, %c0_59], %215 {strides = array<i32>} : memref<8x2x32xf32, #tpu.memory_space<vmem>>, vector<1x2x32xf32>,
    %c6_i32 = arith.constant 6 : i32
    %216 = arith.index_cast %c6_i32 : i32 to index
    %c0_60 = arith.constant 0 : index
    %c0_61 = arith.constant 0 : index
    %217 = vector.load %arg8[%216, %c0_60, %c0_61] : memref<8x2x128xf32, #tpu.memory_space<vmem>>, vector<1x2x128xf32>
    %218 = vector.shape_cast %217 : vector<1x2x128xf32> to vector<2x128xf32>
    %cst_62 = arith.constant dense<0.000000e+00> : vector<2x128xf32>
    %219 = tpu.matmul %211, %0, %cst_62 {dimension_numbers = #tpu.dot_dimension_numbers<[1], [0], [0], [1], [0, 0, 1, 1], [], []>} : vector<2x32xf32>, vector<32x128xf32>, vector<2x128xf32> -> vector<2x128xf32>
    %220 = arith.addf %218, %219 : vector<2x128xf32>
    %221 = vector.extract_strided_slice %220 {offsets = [0, 0], sizes = [2, 32], strides = [1, 1]} : vector<2x128xf32> to vector<2x32xf32>
    %222 = arith.negf %221 : vector<2x32xf32>
    %223 = math.exp %222 : vector<2x32xf32>
    %cst_63 = arith.constant 1.000000e+00 : f32
    %224 = vector.broadcast %cst_63 : f32 to vector<2x32xf32>
    %225 = arith.addf %224, %223 : vector<2x32xf32>
    %226 = arith.divf %224, %225 : vector<2x32xf32>
    %227 = vector.extract_strided_slice %220 {offsets = [0, 32], sizes = [2, 32], strides = [1, 1]} : vector<2x128xf32> to vector<2x32xf32>
    %228 = arith.negf %227 : vector<2x32xf32>
    %229 = math.exp %228 : vector<2x32xf32>
    %cst_64 = arith.constant 1.000000e+00 : f32
    %230 = vector.broadcast %cst_64 : f32 to vector<2x32xf32>
    %231 = arith.addf %230, %229 : vector<2x32xf32>
    %232 = arith.divf %230, %231 : vector<2x32xf32>
    %233 = vector.extract_strided_slice %220 {offsets = [0, 64], sizes = [2, 32], strides = [1, 1]} : vector<2x128xf32> to vector<2x32xf32>
    %234 = math.tanh %233 : vector<2x32xf32>
    %235 = vector.extract_strided_slice %220 {offsets = [0, 96], sizes = [2, 32], strides = [1, 1]} : vector<2x128xf32> to vector<2x32xf32>
    %236 = arith.negf %235 : vector<2x32xf32>
    %237 = math.exp %236 : vector<2x32xf32>
    %cst_65 = arith.constant 1.000000e+00 : f32
    %238 = vector.broadcast %cst_65 : f32 to vector<2x32xf32>
    %239 = arith.addf %238, %237 : vector<2x32xf32>
    %240 = arith.divf %238, %239 : vector<2x32xf32>
    %241 = arith.mulf %232, %209 : vector<2x32xf32>
    %242 = arith.mulf %226, %234 : vector<2x32xf32>
    %243 = arith.addf %241, %242 : vector<2x32xf32>
    %244 = math.tanh %243 : vector<2x32xf32>
    %245 = arith.mulf %240, %244 : vector<2x32xf32>
    %246 = arith.index_cast %c6_i32 : i32 to index
    %c0_66 = arith.constant 0 : index
    %c0_67 = arith.constant 0 : index
    %247 = vector.load %arg6[%246, %c0_66, %c0_67] : memref<8x2x32xf32, #tpu.memory_space<vmem>>, vector<1x2x32xf32>
    %248 = vector.shape_cast %247 : vector<1x2x32xf32> to vector<2x32xf32>
    %249 = vector.shape_cast %245 : vector<2x32xf32> to vector<1x2x32xf32>
    tpu.vector_store %arg6[%246, %c0_66, %c0_67], %249 {strides = array<i32>} : memref<8x2x32xf32, #tpu.memory_space<vmem>>, vector<1x2x32xf32>,
    %c7_i32 = arith.constant 7 : i32
    %250 = arith.index_cast %c7_i32 : i32 to index
    %c0_68 = arith.constant 0 : index
    %c0_69 = arith.constant 0 : index
    %251 = vector.load %arg8[%250, %c0_68, %c0_69] : memref<8x2x128xf32, #tpu.memory_space<vmem>>, vector<1x2x128xf32>
    %252 = vector.shape_cast %251 : vector<1x2x128xf32> to vector<2x128xf32>
    %cst_70 = arith.constant dense<0.000000e+00> : vector<2x128xf32>
    %253 = tpu.matmul %245, %0, %cst_70 {dimension_numbers = #tpu.dot_dimension_numbers<[1], [0], [0], [1], [0, 0, 1, 1], [], []>} : vector<2x32xf32>, vector<32x128xf32>, vector<2x128xf32> -> vector<2x128xf32>
    %254 = arith.addf %252, %253 : vector<2x128xf32>
    %255 = vector.extract_strided_slice %254 {offsets = [0, 0], sizes = [2, 32], strides = [1, 1]} : vector<2x128xf32> to vector<2x32xf32>
    %256 = arith.negf %255 : vector<2x32xf32>
    %257 = math.exp %256 : vector<2x32xf32>
    %cst_71 = arith.constant 1.000000e+00 : f32
    %258 = vector.broadcast %cst_71 : f32 to vector<2x32xf32>
    %259 = arith.addf %258, %257 : vector<2x32xf32>
    %260 = arith.divf %258, %259 : vector<2x32xf32>
    %261 = vector.extract_strided_slice %254 {offsets = [0, 32], sizes = [2, 32], strides = [1, 1]} : vector<2x128xf32> to vector<2x32xf32>
    %262 = arith.negf %261 : vector<2x32xf32>
    %263 = math.exp %262 : vector<2x32xf32>
    %cst_72 = arith.constant 1.000000e+00 : f32
    %264 = vector.broadcast %cst_72 : f32 to vector<2x32xf32>
    %265 = arith.addf %264, %263 : vector<2x32xf32>
    %266 = arith.divf %264, %265 : vector<2x32xf32>
    %267 = vector.extract_strided_slice %254 {offsets = [0, 64], sizes = [2, 32], strides = [1, 1]} : vector<2x128xf32> to vector<2x32xf32>
    %268 = math.tanh %267 : vector<2x32xf32>
    %269 = vector.extract_strided_slice %254 {offsets = [0, 96], sizes = [2, 32], strides = [1, 1]} : vector<2x128xf32> to vector<2x32xf32>
    %270 = arith.negf %269 : vector<2x32xf32>
    %271 = math.exp %270 : vector<2x32xf32>
    %cst_73 = arith.constant 1.000000e+00 : f32
    %272 = vector.broadcast %cst_73 : f32 to vector<2x32xf32>
    %273 = arith.addf %272, %271 : vector<2x32xf32>
    %274 = arith.divf %272, %273 : vector<2x32xf32>
    %275 = arith.mulf %266, %243 : vector<2x32xf32>
    %276 = arith.mulf %260, %268 : vector<2x32xf32>
    %277 = arith.addf %275, %276 : vector<2x32xf32>
    %278 = math.tanh %277 : vector<2x32xf32>
    %279 = arith.mulf %274, %278 : vector<2x32xf32>
    %280 = arith.index_cast %c7_i32 : i32 to index
    %c0_74 = arith.constant 0 : index
    %c0_75 = arith.constant 0 : index
    %281 = vector.load %arg6[%280, %c0_74, %c0_75] : memref<8x2x32xf32, #tpu.memory_space<vmem>>, vector<1x2x32xf32>
    %282 = vector.shape_cast %281 : vector<1x2x32xf32> to vector<2x32xf32>
    %283 = vector.shape_cast %279 : vector<2x32xf32> to vector<1x2x32xf32>
    tpu.vector_store %arg6[%280, %c0_74, %c0_75], %283 {strides = array<i32>} : memref<8x2x32xf32, #tpu.memory_space<vmem>>, vector<1x2x32xf32>,
    %c8_i32 = arith.constant 8 : i32
    %c0_76 = arith.constant 0 : index
    %c0_77 = arith.constant 0 : index
    %c0_78 = arith.constant 0 : index
    %284 = vector.load %arg3[%c0_76, %c0_77, %c0_78] : memref<2x4x2048xbf16, #tpu.memory_space<vmem>>, vector<2x4x2048xbf16>
    %285 = vector.shape_cast %284 : vector<2x4x2048xbf16> to vector<8x2048xbf16>
    %c0_79 = arith.constant 0 : index
    %c0_80 = arith.constant 0 : index
    %286 = vector.load %arg4[%c0_79, %c0_80] : memref<2048x32xbf16, #tpu.memory_space<vmem>>, vector<2048x32xbf16>
    %cst_81 = arith.constant dense<0.000000e+00> : vector<8x32xf32>
    %287 = tpu.matmul %285, %286, %cst_81 {dimension_numbers = #tpu.dot_dimension_numbers<[1], [0], [0], [1], [0, 0, 1, 1], [], []>} : vector<8x2048xbf16>, vector<2048x32xbf16>, vector<8x32xf32> -> vector<8x32xf32>
    %c0_82 = arith.constant 0 : index
    %c0_83 = arith.constant 0 : index
    %288 = vector.load %arg5[%c0_82, %c0_83] : memref<1x32xf32, #tpu.memory_space<vmem>>, vector<1x32xf32>
    %289 = vector.broadcast %288 : vector<1x32xf32> to vector<8x32xf32>
    %290 = arith.addf %287, %289 : vector<8x32xf32>
    %291 = vector.shape_cast %290 : vector<8x32xf32> to vector<2x4x32xf32>
    %c0_84 = arith.constant 0 : index
    %c0_85 = arith.constant 0 : index
    %c0_86 = arith.constant 0 : index
    %292 = vector.load %arg7[%c0_84, %c0_85, %c0_86] : memref<2x4x32xf32, #tpu.memory_space<vmem>>, vector<2x4x32xf32>
    tpu.vector_store %arg7[%c0_84, %c0_85, %c0_86], %291 {strides = array<i32>} : memref<2x4x32xf32, #tpu.memory_space<vmem>>, vector<2x4x32xf32>,
    return
  }
}

</mosaic_0001>

<llo_original>
// kernel: tpu_custom_call.1
$region0: #{tpu_custom_call.1}
  #allocation0 [shape = 'u32[]', space=smem, size = 0x4, offset = 0x4, fixed_abs, tag = 'smem constant byte address 0x4 - core index']
  #allocation1 [shape = 'u32[144,128]{1,0:T(1,128)}', space=vmem, size = 0x12000, scoped, tag = 'internal scratch']
  #allocation2 [shape = 'f32[8,2,128]{2,1,0:T(2,128)}', space=vmem, size = 0x2000, scoped, tag = 'scratch operand']
  %s0 = inlined_call_operand.vmem [shape: bf16[8,2,300], index: 0, kind: input, shape index: {}]
  %s1 = inlined_call_operand.vmem [shape: bf16[300,128], index: 1, kind: input, shape index: {}]
  %s2 = inlined_call_operand.vmem [shape: f32[33,128], index: 2, kind: input, shape index: {}]
  %s3 = inlined_call_operand.vmem [shape: bf16[2,4,2048], index: 3, kind: input, shape index: {}]
  %s4 = inlined_call_operand.vmem [shape: bf16[2048,32], index: 4, kind: input, shape index: {}]
  %s5 = inlined_call_operand.vmem [shape: f32[1,32], index: 5, kind: input, shape index: {}]
  %s6 = inlined_call_operand.hbm [shape: f32[8,2,32], index: 6, kind: output, shape index: {0}]
  %s7 = inlined_call_operand.hbm [shape: f32[2,4,32], index: 7, kind: output, shape index: {1}]
  %8 = xla_tuple %s6, %s7
  %s9 = sld [smem:[#allocation0]]
  $region42: #{tpu_custom_call.1} parent=0
    _
  %s11 = ssub.s32 1, %s9
  %s12 = scalar_select 0, %s11, %s9
  $region1: #{tpu_custom_call.1} parent=0
    #allocation3 [shape = 'u8[8192]{0}', space=vmem, size = 0x2000, scoped, tag = 'output window, operand 0, single buffered']
    #allocation4 [shape = 's32[1]{0}', space=sflag, size = 0x4, scoped, tag = 'scoped memory for tpu_custom_call.1']
    #allocation5 [shape = 'u8[4096]{0}', space=vmem, size = 0x1000, scoped, tag = 'output window, operand 1, single buffered']
    #allocation6 [shape = 's32[1]{0}', space=sflag, size = 0x4, scoped, tag = 'scoped memory for tpu_custom_call.1']
    %13 = vsyncpa [#allocation4], 0
    %14 = vsyncpa [#allocation6], 0
    // Predicated region
    $region2: #{tpu_custom_call.1} parent=1 // pred_check
      _
    $region3: #{tpu_custom_call.1} parent=1 // pred_check_branch
      %16 = sbr.rel (0) target = $region5
    $region4: #{tpu_custom_call.1} parent=1 // pred_region
      _
    $region5: #{tpu_custom_call.1} parent=1 // pred_fallthru
      _
    // Predicated region
    $region6: #{tpu_custom_call.1} parent=1 // pred_check
      _
    $region7: #{tpu_custom_call.1} parent=1 // pred_check_branch
      %18 = sbr.rel (0) target = $region9
    $region8: #{tpu_custom_call.1} parent=1 // pred_region
      _
    $region9: #{tpu_custom_call.1} parent=1 // pred_fallthru
      _
    // Predicated region
    $region10: #{tpu_custom_call.1} parent=1 // pred_check
      _
    $region11: #{tpu_custom_call.1} parent=1 // pred_check_branch
      %20 = sbr.rel (0) target = $region13
    $region12: #{tpu_custom_call.1} parent=1 // pred_region
      _
    $region13: #{tpu_custom_call.1} parent=1 // pred_fallthru
      _
    // Predicated region
    $region14: #{tpu_custom_call.1} parent=1 // pred_check
      _
    $region15: #{tpu_custom_call.1} parent=1 // pred_check_branch
      %22 = sbr.rel (0) target = $region17
    $region16: #{tpu_custom_call.1} parent=1 // pred_region
      _
    $region17: #{tpu_custom_call.1} parent=1 // pred_fallthru
      _
    // Predicated region
    $region18: #{tpu_custom_call.1} parent=1 // pred_check
      _
    $region19: #{tpu_custom_call.1} parent=1 // pred_check_branch
      %24 = sbr.rel (0) target = $region21
    $region20: #{tpu_custom_call.1} parent=1 // pred_region
      _
    $region21: #{tpu_custom_call.1} parent=1 // pred_fallthru
      _
    // Predicated region
    $region22: #{tpu_custom_call.1} parent=1 // pred_check
      _
    $region23: #{tpu_custom_call.1} parent=1 // pred_check_branch
      %26 = sbr.rel (0) target = $region25
    $region24: #{tpu_custom_call.1} parent=1 // pred_region
      _
    $region25: #{tpu_custom_call.1} parent=1 // pred_fallthru
      _
    %v28 = vld [vmem:[%s2] sm:$0xff]
    %v29 = vld [vmem:[%s2 + $0x8] sm:$0xff]
    %v30 = vld [vmem:[%s2 + $0x10] sm:$0xff]
    %v31 = vld [vmem:[%s2 + $0x18] sm:$0xff]
    %v32 = vld [vmem:[%s2 + $0x20] sm:$0x1]
    %v33 = vld [vmem:[%s0] sm:$0x7]
    %v34 = vld [vmem:[%s0 + $0x3] sm:$0x7]
    %v35 = vld [vmem:[%s0 + $0x6] sm:$0x7]
    %v36 = vld [vmem:[%s0 + $0x9] sm:$0x7]
    %v37 = vld [vmem:[%s0 + $0xc] sm:$0x7]
    %v38 = vld [vmem:[%s0 + $0xf] sm:$0x7]
    %v39 = vld [vmem:[%s0 + $0x12] sm:$0x7]
    %v40 = vld [vmem:[%s0 + $0x15] sm:$0x7]
    %v41 = vld [vmem:[%s1] sm:$0xf]
    %v42 = vld [vmem:[%s1 + $0x4] sm:$0xf]
    %v43 = vld [vmem:[%s1 + $0x8] sm:$0xf]
    %v44 = vld [vmem:[%s1 + $0xc] sm:$0xf]
    %v45 = vld [vmem:[%s1 + $0x10] sm:$0xf]
    %v46 = vld [vmem:[%s1 + $0x14] sm:$0xf]
    %v47 = vld [vmem:[%s1 + $0x18] sm:$0xf]
    %v48 = vld [vmem:[%s1 + $0x1c] sm:$0xf]
    %v49 = vld [vmem:[%s1 + $0x20] sm:$0xf]
    %v50 = vld [vmem:[%s1 + $0x24] sm:$0xf]
    %v51 = vld [vmem:[%s1 + $0x28] sm:$0xf]
    %v52 = vld [vmem:[%s1 + $0x2c] sm:$0xf]
    %v53 = vld [vmem:[%s1 + $0x30] sm:$0xf]
    %v54 = vld [vmem:[%s1 + $0x34] sm:$0xf]
    %v55 = vld [vmem:[%s1 + $0x38] sm:$0xf]
    %v56 = vld [vmem:[%s1 + $0x3c] sm:$0xf]
    %v57 = vld [vmem:[%s1 + $0x40] sm:$0xf]
    %v58 = vld [vmem:[%s1 + $0x44] sm:$0xf]
    %v59 = vld [vmem:[%s1 + $0x48] sm:$0xf]
    %v60 = vld [vmem:[%s1 + $0x4c] sm:$0xf]
    %v61 = vld [vmem:[%s1 + $0x50] sm:$0xf]
    %v62 = vld [vmem:[%s1 + $0x54] sm:$0xf]
    %v63 = vld [vmem:[%s1 + $0x58] sm:$0xf]
    %v64 = vld [vmem:[%s1 + $0x5c] sm:$0xf]
    %v65 = vld [vmem:[%s1 + $0x60] sm:$0xf]
    %v66 = vld [vmem:[%s1 + $0x64] sm:$0xf]
    %v67 = vld [vmem:[%s1 + $0x68] sm:$0xf]
    %v68 = vld [vmem:[%s1 + $0x6c] sm:$0xf]
    %v69 = vld [vmem:[%s1 + $0x70] sm:$0xf]
    %v70 = vld [vmem:[%s1 + $0x74] sm:$0xf]
    %v71 = vld [vmem:[%s1 + $0x78] sm:$0xf]
    %v72 = vld [vmem:[%s1 + $0x7c] sm:$0xf]
    %v73 = vld [vmem:[%s1 + $0x80] sm:$0xf]
    %v74 = vld [vmem:[%s1 + $0x84] sm:$0xf]
    %v75 = vld [vmem:[%s1 + $0x88] sm:$0xf]
    %v76 = vld [vmem:[%s1 + $0x8c] sm:$0xf]
    %v77 = vld [vmem:[%s1 + $0x90] sm:$0xf]
    %v78 = vld [vmem:[%s1 + $0x94] sm:$0x3]
    %v79 = vlaneseq
    %v80 = vshrl.u32 %v79, 7
    %v81 = vsub.s32 0, %v80
    %v82 = vrot.slane %v32, %v81
    %v91 = vcombine.low %v33, %v34
    %v92 = vcombine.low %v35, %v36
    %v93 = vcombine.low %v37, %v38
    %v94 = vcombine.low %v39, %v40
    %v96 = vunpack.c.l.s4 1966171168
    %v97 = vunpack.c.0.s8 %v96
    %v98 = vlaneseq
    %v99 = vshrl.u32 %v98, 7
    %v100 = vsub.s32 %v97, %v99
    %v101 = vrot.slane %v91, %v100
    %v103 = vunpack.c.l.s4 1966171168
    %v104 = vunpack.c.0.s8 %v103
    %v105 = vlaneseq
    %v106 = vshrl.u32 %v105, 7
    %v107 = vsub.s32 %v104, %v106
    %v108 = vrot.slane %v92, %v107
    %v110 = vunpack.c.l.s4 1966171168
    %v111 = vunpack.c.0.s8 %v110
    %v112 = vlaneseq
    %v113 = vshrl.u32 %v112, 7
    %v114 = vsub.s32 %v111, %v113
    %v115 = vrot.slane %v93, %v114
    %v117 = vunpack.c.l.s4 1966171168
    %v118 = vunpack.c.0.s8 %v117
    %v119 = vlaneseq
    %v120 = vshrl.u32 %v119, 7
    %v121 = vsub.s32 %v118, %v120
    %v122 = vrot.slane %v94, %v121
    %v123 = vcombine.low %v101, %v108
    %v124 = vcombine.high %v101, %v108
    %v125 = vcombine.low %v115, %v122
    %v126 = vcombine.high %v115, %v122
    %v128 = vunpack.c.l.s4 1966171168
    %v129 = vunpack.c.0.s8 %v128
    %v130 = vlaneseq
    %v131 = vshrl.u32 %v130, 7
    %v132 = vsub.s32 %v129, %v131
    %v133 = vrot.slane %v123, %v132
    %v135 = vunpack.c.l.s4 1966171168
    %v136 = vunpack.c.0.s8 %v135
    %v137 = vlaneseq
    %v138 = vshrl.u32 %v137, 7
    %v139 = vsub.s32 %v136, %v138
    %v140 = vrot.slane %v124, %v139
    %v142 = vunpack.c.l.s4 1966171168
    %v143 = vunpack.c.0.s8 %v142
    %v144 = vlaneseq
    %v145 = vshrl.u32 %v144, 7
    %v146 = vsub.s32 %v143, %v145
    %v147 = vrot.slane %v125, %v146
    %v149 = vunpack.c.l.s4 1966171168
    %v150 = vunpack.c.0.s8 %v149
    %v151 = vlaneseq
    %v152 = vshrl.u32 %v151, 7
    %v153 = vsub.s32 %v150, %v152
    %v154 = vrot.slane %v126, %v153
    %v155 = vcombine.low %v133, %v147
    %v156 = vcombine.high %v133, %v147
    %v157 = vcombine.low %v140, %v154
    %v198 = vunpack.c.l.b16 %v41
    %v199 = vunpack.c.l.b16 %v42
    %v200 = vunpack.c.l.b16 %v43
    %v201 = vunpack.c.l.b16 %v44
    %v202 = vunpack.c.l.b16 %v45
    %v203 = vunpack.c.l.b16 %v46
    %v204 = vunpack.c.l.b16 %v47
    %v205 = vunpack.c.l.b16 %v48
    %v206 = vunpack.c.l.b16 %v49
    %v207 = vunpack.c.l.b16 %v50
    %v208 = vunpack.c.l.b16 %v51
    %v209 = vunpack.c.l.b16 %v52
    %v210 = vunpack.c.l.b16 %v53
    %v211 = vunpack.c.l.b16 %v54
    %v212 = vunpack.c.l.b16 %v55
    %v213 = vunpack.c.l.b16 %v56
    %v214 = vunpack.c.l.b16 %v57
    %v215 = vunpack.c.l.b16 %v58
    %v216 = vunpack.c.l.b16 %v59
    %v217 = vunpack.c.l.b16 %v60
    %v218 = vunpack.c.l.b16 %v61
    %v219 = vunpack.c.l.b16 %v62
    %v220 = vunpack.c.l.b16 %v63
    %v221 = vunpack.c.l.b16 %v64
    %v222 = vunpack.c.l.b16 %v65
    %v223 = vunpack.c.l.b16 %v66
    %v224 = vunpack.c.l.b16 %v67
    %v225 = vunpack.c.l.b16 %v68
    %v226 = vunpack.c.l.b16 %v69
    %v227 = vunpack.c.l.b16 %v70
    %v228 = vunpack.c.l.b16 %v71
    %v229 = vunpack.c.l.b16 %v72
    %v230 = vunpack.c.l.b16 %v73
    %v231 = vunpack.c.l.b16 %v74
    %v232 = vunpack.c.l.b16 %v75
    %v233 = vunpack.c.l.b16 %v76
    %v234 = vunpack.c.l.b16 %v77
    %v235 = vunpack.c.l.b16 %v78
    %v236 = vpack.c.b16 %v199, %v198
    %v237 = vpack.c.b16 %v201, %v200
    %v238 = vpack.c.b16 %v203, %v202
    %v239 = vpack.c.b16 %v205, %v204
    %v240 = vpack.c.b16 %v207, %v206
    %v241 = vpack.c.b16 %v209, %v208
    %v242 = vpack.c.b16 %v211, %v210
    %v243 = vpack.c.b16 %v213, %v212
    %v244 = vpack.c.b16 %v215, %v214
    %v245 = vpack.c.b16 %v217, %v216
    %v246 = vpack.c.b16 %v219, %v218
    %v247 = vpack.c.b16 %v221, %v220
    %v248 = vpack.c.b16 %v223, %v222
    %v249 = vpack.c.b16 %v225, %v224
    %v250 = vpack.c.b16 %v227, %v226
    %v251 = vpack.c.b16 %v229, %v228
    %v252 = vpack.c.b16 %v231, %v230
    %v253 = vpack.c.b16 %v233, %v232
    %v254 = vpack.c.b16 %v235, %v234
    %vm273 = vcmask 359424
    %v275 = vsel %vm273, %v156, 0
    %vm277 = vcmask 1045504
    %v279 = vsel %vm277, %v254, 0
    %281 = vmatprep.subr.bf16.mxu0 0
    %282 = vmatpush1.bf16.msra.mxu0 %v243
    %283 = vmatprep.subr.bf16.mxu0 0
    %284 = vmatpush1.bf16.msra.mxu0 %v242
    %285 = vmatprep.subr.bf16.mxu0 0
    %286 = vmatpush1.bf16.msra.mxu0 %v241
    %287 = vmatprep.subr.bf16.mxu0 0
    %288 = vmatpush1.bf16.msra.mxu0 %v240
    %289 = vmatprep.subr.bf16.mxu0 0
    %290 = vmatpush1.bf16.msra.mxu0 %v239
    %291 = vmatprep.subr.bf16.mxu0 0
    %292 = vmatpush1.bf16.msra.mxu0 %v238
    %293 = vmatprep.subr.bf16.mxu0 0
    %294 = vmatpush1.bf16.msra.mxu0 %v237
    %295 = vmatprep.subr.bf16.mxu0 0
    %296 = vmatpush1.bf16.msra.mxu0 %v236
    %297 = vmatprep.subr.bf16.mxu0 0
    %298 = vmatpush2.bf16.msra.mxu0 %v251
    %299 = vmatprep.subr.bf16.mxu0 0
    %300 = vmatpush2.bf16.msra.mxu0 %v250
    %301 = vmatprep.subr.bf16.mxu0 0
    %302 = vmatpush2.bf16.msra.mxu0 %v249
    %303 = vmatprep.subr.bf16.mxu0 0
    %304 = vmatpush2.bf16.msra.mxu0 %v248
    %305 = vmatprep.subr.bf16.mxu0 0
    %306 = vmatpush2.bf16.msra.mxu0 %v247
    %307 = vmatprep.subr.bf16.mxu0 0
    %308 = vmatpush2.bf16.msra.mxu0 %v246
    %309 = vmatprep.subr.bf16.mxu0 0
    %310 = vmatpush2.bf16.msra.mxu0 %v245
    %311 = vmatprep.subr.bf16.mxu0 0
    %312 = vmatpush2.bf16.msra.mxu0 %v244
    %313 = vmatprep.mubr.bf16.mxu0 %v157
    %314 = vmatmul.mubr.bf16.gmra.mxu0 %v155
    %v315 = vpop.f32.mrf.mxu0
    %v316 = vadd.f32 %v82, %v315
    %v317 = vpop.f32.mrf.mxu0
    %v318 = vpop.f32.mrf.mxu0
    %v319 = vadd.f32 %v82, %v318
    %v320 = vpop.f32.mrf.mxu0
    %321 = vdwg.mxu0
    %322 = vmatprep.subr.bf16.mxu0 0
    %323 = vmatpush1.bf16.msra.mxu0 0
    %324 = vmatprep.subr.bf16.mxu0 0
    %325 = vmatpush1.bf16.msra.mxu0 0
    %326 = vmatprep.subr.bf16.mxu0 0
    %327 = vmatpush1.bf16.msra.mxu0 0
    %328 = vmatprep.subr.bf16.mxu0 0
    %329 = vmatpush1.bf16.msra.mxu0 0
    %330 = vmatprep.subr.bf16.mxu0 0
    %331 = vmatpush1.bf16.msra.mxu0 0
    %332 = vmatprep.subr.bf16.mxu0 0
    %333 = vmatpush1.bf16.msra.mxu0 %v279
    %334 = vmatprep.subr.bf16.mxu0 0
    %335 = vmatpush1.bf16.msra.mxu0 %v253
    %336 = vmatprep.subr.bf16.mxu0 0
    %337 = vmatpush1.bf16.msra.mxu0 %v252
    %338 = vmatprep.subr.bf16.mxu0 0
    %339 = vmatpush2.bf16.msra.mxu0 0
    %340 = vmatprep.subr.bf16.mxu0 0
    %341 = vmatpush2.bf16.msra.mxu0 0
    %342 = vmatprep.subr.bf16.mxu0 0
    %343 = vmatpush2.bf16.msra.mxu0 0
    %344 = vmatprep.subr.bf16.mxu0 0
    %345 = vmatpush2.bf16.msra.mxu0 0
    %346 = vmatprep.subr.bf16.mxu0 0
    %347 = vmatpush2.bf16.msra.mxu0 0
    %348 = vmatprep.subr.bf16.mxu0 0
    %349 = vmatpush2.bf16.msra.mxu0 0
    %350 = vmatprep.subr.bf16.mxu0 0
    %351 = vmatpush2.bf16.msra.mxu0 0
    %352 = vmatprep.subr.bf16.mxu0 0
    %353 = vmatpush2.bf16.msra.mxu0 0
    %354 = vmatprep.mubr.bf16.mxu0 0
    %355 = vmatmul.mubr.bf16.gmra.mxu0 %v275
    %v356 = vpop.f32.mrf.mxu0
    %v357 = vadd.f32 %v316, %v356
    %v358 = vpop.f32.mrf.mxu0
    %v359 = vpop.f32.mrf.mxu0
    %v360 = vadd.f32 %v319, %v359
    %v361 = vpop.f32.mrf.mxu0
    %362 = vdwg.mxu0
    %v365 = vcombine.high %v357, %v357
    %v367 = vunpack.c.l.s4 1983009808
    %v368 = vunpack.c.0.s8 %v367
    %v369 = vlaneseq
    %v370 = vshrl.u32 %v369, 7
    %v371 = vsub.s32 %v368, %v370
    %v372 = vrot.slane %v357, %v371
    %v374 = vunpack.c.l.s4 1983009808
    %v375 = vunpack.c.0.s8 %v374
    %v376 = vlaneseq
    %v377 = vshrl.u32 %v376, 7
    %v378 = vsub.s32 %v375, %v377
    %v379 = vrot.slane %v365, %v378
    %v380 = vcombine.high %v372, %v372
    %v381 = vcombine.high %v379, %v379
    %v382 = vcombine.high %v360, %v360
    %v384 = vunpack.c.l.s4 1983009808
    %v385 = vunpack.c.0.s8 %v384
    %v386 = vlaneseq
    %v387 = vshrl.u32 %v386, 7
    %v388 = vsub.s32 %v385, %v387
    %v389 = vrot.slane %v360, %v388
    %v391 = vunpack.c.l.s4 1983009808
    %v392 = vunpack.c.0.s8 %v391
    %v393 = vlaneseq
    %v394 = vshrl.u32 %v393, 7
    %v395 = vsub.s32 %v392, %v394
    %v396 = vrot.slane %v382, %v395
    %v397 = vcombine.high %v389, %v389
    %v398 = vcombine.high %v396, %v396
    %407 = vst [vmem:[#allocation2] sm:$0x3] %v372
    %408 = vst [vmem:[#allocation2 + $0x2] sm:$0x3] %v380
    %409 = vst [vmem:[#allocation2 + $0x4] sm:$0x3] %v379
    %410 = vst [vmem:[#allocation2 + $0x6] sm:$0x3] %v381
    %411 = vst [vmem:[#allocation2 + $0x8] sm:$0x3] %v389
    %412 = vst [vmem:[#allocation2 + $0xa] sm:$0x3] %v397
    %413 = vst [vmem:[#allocation2 + $0xc] sm:$0x3] %v396
    %414 = vst [vmem:[#allocation2 + $0xe] sm:$0x3] %v398
    %v415 = vld [vmem:[#allocation2] sm:$0x3]
    %vm416 = vcmask 261120
    %v418 = vsel %vm416, 0.0, 0
    %420 = vmatprep.subr.mxu0 0.0
    %421 = vmatpush1.msra.mxu0 0.0
    %422 = vmatprep.subr.mxu0 0.0
    %423 = vmatpush1.msra.mxu0 0.0
    %424 = vmatprep.subr.mxu0 0.0
    %425 = vmatpush1.msra.mxu0 0.0
    %426 = vmatprep.subr.mxu0 0.0
    %427 = vmatpush1.msra.mxu0 0.0
    %428 = vmatprep.subr.mxu0 0.0
    %429 = vmatpush1.msra.mxu0 0.0
    %430 = vmatprep.subr.mxu0 0.0
    %431 = vmatpush1.msra.mxu0 0.0
    %432 = vmatprep.subr.mxu0 0.0
    %433 = vmatpush1.msra.mxu0 0.0
    %434 = vmatprep.subr.mxu0 0.0
    %435 = vmatpush1.msra.mxu0 0.0
    %436 = vmatprep.subr.mxu0 0.0
    %437 = vmatpush1.msra.mxu0 0.0
    %438 = vmatprep.subr.mxu0 0.0
    %439 = vmatpush1.msra.mxu0 0.0
    %440 = vmatprep.subr.mxu0 0.0
    %441 = vmatpush1.msra.mxu0 0.0
    %442 = vmatprep.subr.mxu0 0.0
    %443 = vmatpush1.msra.mxu0 0.0
    %444 = vmatprep.subr.mxu0 0.0
    %445 = vmatpush1.msra.mxu0 %v31
    %446 = vmatprep.subr.mxu0 0.0
    %447 = vmatpush1.msra.mxu0 %v30
    %448 = vmatprep.subr.mxu0 0.0
    %449 = vmatpush1.msra.mxu0 %v29
    %450 = vmatprep.subr.mxu0 0.0
    %451 = vmatpush1.msra.mxu0 %v28
    %452 = vmatprep.subr.mxu0 0.0
    %453 = vmatpush2.msra.mxu0 0.0
    %454 = vmatprep.subr.mxu0 0.0
    %455 = vmatpush2.msra.mxu0 0.0
    %456 = vmatprep.subr.mxu0 0.0
    %457 = vmatpush2.msra.mxu0 0.0
    %458 = vmatprep.subr.mxu0 0.0
    %459 = vmatpush2.msra.mxu0 0.0
    %460 = vmatprep.subr.mxu0 0.0
    %461 = vmatpush2.msra.mxu0 0.0
    %462 = vmatprep.subr.mxu0 0.0
    %463 = vmatpush2.msra.mxu0 0.0
    %464 = vmatprep.subr.mxu0 0.0
    %465 = vmatpush2.msra.mxu0 0.0
    %466 = vmatprep.subr.mxu0 0.0
    %467 = vmatpush2.msra.mxu0 0.0
    %468 = vmatprep.subr.mxu0 0.0
    %469 = vmatpush2.msra.mxu0 0.0
    %470 = vmatprep.subr.mxu0 0.0
    %471 = vmatpush2.msra.mxu0 0.0
    %472 = vmatprep.subr.mxu0 0.0
    %473 = vmatpush2.msra.mxu0 0.0
    %474 = vmatprep.subr.mxu0 0.0
    %475 = vmatpush2.msra.mxu0 0.0
    %476 = vmatprep.subr.mxu0 0.0
    %477 = vmatpush2.msra.mxu0 0.0
    %478 = vmatprep.subr.mxu0 0.0
    %479 = vmatpush2.msra.mxu0 0.0
    %480 = vmatprep.subr.mxu0 0.0
    %481 = vmatpush2.msra.mxu0 0.0
    %482 = vmatprep.subr.mxu0 0.0
    %483 = vmatpush2.msra.mxu0 0.0
    %484 = vmatprep.mubr.f32.mxu0 0.0
    %485 = vmatmul.mubr.f32.gmra.mxu0 %v418
    %v486 = vpop.f32.mrf.mxu0
    %v487 = vadd.f32 0.0, %v486
    %v488 = vpop.f32.mrf.mxu0
    %489 = vdwg.mxu0
    %v490 = vadd.f32 %v415, %v487
    %v491 = vxor.u32 %v490, 2147483648
    %v492 = vmul.f32 %v491, 1.442695
    %v493 = vpow.pop %v492
    %v494 = vadd.f32 %v493, 1.0
    %v495 = vrcp.pop %v494
    %v496 = vmul.f32 1.0, %v495
    %v497 = vtanh.pop %v490
    %v498 = vmul.f32 %v496, 0.0
    %500 = vrot.lane.b32.xlu0 %v497, 64
    %v501 = vpop.permute.xlu0 %500
    %v503 = vmul.f32 %v496, %v501
    %505 = vrot.lane.b32.xlu0 %v503, 32
    %v506 = vpop.permute.xlu0 %505
    %v508 = vadd.f32 %v498, %v506
    %v509 = vtanh.pop %v508
    %511 = vrot.lane.b32.xlu0 %v509, 64
    %v512 = vpop.permute.xlu0 %511
    %v514 = vmul.f32 %v496, %v512
    %516 = vrot.lane.b32.xlu0 %v514, 32
    %v517 = vpop.permute.xlu0 %516
    %vm519 = vcmask 254976
    %520 = vst.msk [vmem:[#allocation3] sm:$0x3] %vm519, %v517
    %s521 = scalar_lea.vmem [#allocation2], 2
    %v522 = vld [vmem:[%s521] sm:$0x3]
    %v523 = vsel %vm416, %v517, 0
    %525 = vmatprep.subr.mxu0 0.0
    %526 = vmatpush1.msra.mxu0 0.0
    %527 = vmatprep.subr.mxu0 0.0
    %528 = vmatpush1.msra.mxu0 0.0
    %529 = vmatprep.subr.mxu0 0.0
    %530 = vmatpush1.msra.mxu0 0.0
    %531 = vmatprep.subr.mxu0 0.0
    %532 = vmatpush1.msra.mxu0 0.0
    %533 = vmatprep.subr.mxu0 0.0
    %534 = vmatpush1.msra.mxu0 0.0
    %535 = vmatprep.subr.mxu0 0.0
    %536 = vmatpush1.msra.mxu0 0.0
    %537 = vmatprep.subr.mxu0 0.0
    %538 = vmatpush1.msra.mxu0 0.0
    %539 = vmatprep.subr.mxu0 0.0
    %540 = vmatpush1.msra.mxu0 0.0
    %541 = vmatprep.subr.mxu0 0.0
    %542 = vmatpush1.msra.mxu0 0.0
    %543 = vmatprep.subr.mxu0 0.0
    %544 = vmatpush1.msra.mxu0 0.0
    %545 = vmatprep.subr.mxu0 0.0
    %546 = vmatpush1.msra.mxu0 0.0
    %547 = vmatprep.subr.mxu0 0.0
    %548 = vmatpush1.msra.mxu0 0.0
    %549 = vmatprep.subr.mxu0 0.0
    %550 = vmatpush1.msra.mxu0 %v31
    %551 = vmatprep.subr.mxu0 0.0
    %552 = vmatpush1.msra.mxu0 %v30
    %553 = vmatprep.subr.mxu0 0.0
    %554 = vmatpush1.msra.mxu0 %v29
    %555 = vmatprep.subr.mxu0 0.0
    %556 = vmatpush1.msra.mxu0 %v28
    %557 = vmatprep.subr.mxu0 0.0
    %558 = vmatpush2.msra.mxu0 0.0
    %559 = vmatprep.subr.mxu0 0.0
    %560 = vmatpush2.msra.mxu0 0.0
    %561 = vmatprep.subr.mxu0 0.0
    %562 = vmatpush2.msra.mxu0 0.0
    %563 = vmatprep.subr.mxu0 0.0
    %564 = vmatpush2.msra.mxu0 0.0
    %565 = vmatprep.subr.mxu0 0.0
    %566 = vmatpush2.msra.mxu0 0.0
    %567 = vmatprep.subr.mxu0 0.0
    %568 = vmatpush2.msra.mxu0 0.0
    %569 = vmatprep.subr.mxu0 0.0
    %570 = vmatpush2.msra.mxu0 0.0
    %571 = vmatprep.subr.mxu0 0.0
    %572 = vmatpush2.msra.mxu0 0.0
    %573 = vmatprep.subr.mxu0 0.0
    %574 = vmatpush2.msra.mxu0 0.0
    %575 = vmatprep.subr.mxu0 0.0
    %576 = vmatpush2.msra.mxu0 0.0
    %577 = vmatprep.subr.mxu0 0.0
    %578 = vmatpush2.msra.mxu0 0.0
    %579 = vmatprep.subr.mxu0 0.0
    %580 = vmatpush2.msra.mxu0 0.0
    %581 = vmatprep.subr.mxu0 0.0
    %582 = vmatpush2.msra.mxu0 0.0
    %583 = vmatprep.subr.mxu0 0.0
    %584 = vmatpush2.msra.mxu0 0.0
    %585 = vmatprep.subr.mxu0 0.0
    %586 = vmatpush2.msra.mxu0 0.0
    %587 = vmatprep.subr.mxu0 0.0
    %588 = vmatpush2.msra.mxu0 0.0
    %589 = vmatprep.mubr.f32.mxu0 0.0
    %590 = vmatmul.mubr.f32.gmra.mxu0 %v523
    %v591 = vpop.f32.mrf.mxu0
    %v592 = vadd.f32 0.0, %v591
    %v593 = vpop.f32.mrf.mxu0
    %594 = vdwg.mxu0
    %v595 = vadd.f32 %v522, %v592
    %v596 = vxor.u32 %v595, 2147483648
    %v597 = vmul.f32 %v596, 1.442695
    %v598 = vpow.pop %v597
    %v599 = vadd.f32 %v598, 1.0
    %v600 = vrcp.pop %v599
    %v601 = vmul.f32 1.0, %v600
    %v602 = vtanh.pop %v595
    %v603 = vmul.f32 %v601, %v508
    %605 = vrot.lane.b32.xlu0 %v602, 64
    %v606 = vpop.permute.xlu0 %605
    %v608 = vmul.f32 %v601, %v606
    %610 = vrot.lane.b32.xlu0 %v608, 32
    %v611 = vpop.permute.xlu0 %610
    %v613 = vadd.f32 %v603, %v611
    %v614 = vtanh.pop %v613
    %616 = vrot.lane.b32.xlu0 %v614, 64
    %v617 = vpop.permute.xlu0 %616
    %v619 = vmul.f32 %v601, %v617
    %621 = vrot.lane.b32.xlu0 %v619, 32
    %v622 = vpop.permute.xlu0 %621
    %s624 = scalar_lea.vmem [#allocation3], 2
    %625 = vst.msk [vmem:[%s624] sm:$0x3] %vm519, %v622
    %s626 = scalar_lea.vmem [#allocation2], 4
    %v627 = vld [vmem:[%s626] sm:$0x3]
    %v628 = vsel %vm416, %v622, 0
    %630 = vmatprep.subr.mxu0 0.0
    %631 = vmatpush1.msra.mxu0 0.0
    %632 = vmatprep.subr.mxu0 0.0
    %633 = vmatpush1.msra.mxu0 0.0
    %634 = vmatprep.subr.mxu0 0.0
    %635 = vmatpush1.msra.mxu0 0.0
    %636 = vmatprep.subr.mxu0 0.0
    %637 = vmatpush1.msra.mxu0 0.0
    %638 = vmatprep.subr.mxu0 0.0
    %639 = vmatpush1.msra.mxu0 0.0
    %640 = vmatprep.subr.mxu0 0.0
    %641 = vmatpush1.msra.mxu0 0.0
    %642 = vmatprep.subr.mxu0 0.0
    %643 = vmatpush1.msra.mxu0 0.0
    %644 = vmatprep.subr.mxu0 0.0
    %645 = vmatpush1.msra.mxu0 0.0
    %646 = vmatprep.subr.mxu0 0.0
    %647 = vmatpush1.msra.mxu0 0.0
    %648 = vmatprep.subr.mxu0 0.0
    %649 = vmatpush1.msra.mxu0 0.0
    %650 = vmatprep.subr.mxu0 0.0
    %651 = vmatpush1.msra.mxu0 0.0
    %652 = vmatprep.subr.mxu0 0.0
    %653 = vmatpush1.msra.mxu0 0.0
    %654 = vmatprep.subr.mxu0 0.0
    %655 = vmatpush1.msra.mxu0 %v31
    %656 = vmatprep.subr.mxu0 0.0
    %657 = vmatpush1.msra.mxu0 %v30
    %658 = vmatprep.subr.mxu0 0.0
    %659 = vmatpush1.msra.mxu0 %v29
    %660 = vmatprep.subr.mxu0 0.0
    %661 = vmatpush1.msra.mxu0 %v28
    %662 = vmatprep.subr.mxu0 0.0
    %663 = vmatpush2.msra.mxu0 0.0
    %664 = vmatprep.subr.mxu0 0.0
    %665 = vmatpush2.msra.mxu0 0.0
    %666 = vmatprep.subr.mxu0 0.0
    %667 = vmatpush2.msra.mxu0 0.0
    %668 = vmatprep.subr.mxu0 0.0
    %669 = vmatpush2.msra.mxu0 0.0
    %670 = vmatprep.subr.mxu0 0.0
    %671 = vmatpush2.msra.mxu0 0.0
    %672 = vmatprep.subr.mxu0 0.0
    %673 = vmatpush2.msra.mxu0 0.0
    %674 = vmatprep.subr.mxu0 0.0
    %675 = vmatpush2.msra.mxu0 0.0
    %676 = vmatprep.subr.mxu0 0.0
    %677 = vmatpush2.msra.mxu0 0.0
    %678 = vmatprep.subr.mxu0 0.0
    %679 = vmatpush2.msra.mxu0 0.0
    %680 = vmatprep.subr.mxu0 0.0
    %681 = vmatpush2.msra.mxu0 0.0
    %682 = vmatprep.subr.mxu0 0.0
    %683 = vmatpush2.msra.mxu0 0.0
    %684 = vmatprep.subr.mxu0 0.0
    %685 = vmatpush2.msra.mxu0 0.0
    %686 = vmatprep.subr.mxu0 0.0
    %687 = vmatpush2.msra.mxu0 0.0
    %688 = vmatprep.subr.mxu0 0.0
    %689 = vmatpush2.msra.mxu0 0.0
    %690 = vmatprep.subr.mxu0 0.0
    %691 = vmatpush2.msra.mxu0 0.0
    %692 = vmatprep.subr.mxu0 0.0
    %693 = vmatpush2.msra.mxu0 0.0
    %694 = vmatprep.mubr.f32.mxu0 0.0
    %695 = vmatmul.mubr.f32.gmra.mxu0 %v628
    %v696 = vpop.f32.mrf.mxu0
    %v697 = vadd.f32 0.0, %v696
    %v698 = vpop.f32.mrf.mxu0
    %699 = vdwg.mxu0
    %v700 = vadd.f32 %v627, %v697
    %v701 = vxor.u32 %v700, 2147483648
    %v702 = vmul.f32 %v701, 1.442695
    %v703 = vpow.pop %v702
    %v704 = vadd.f32 %v703, 1.0
    %v705 = vrcp.pop %v704
    %v706 = vmul.f32 1.0, %v705
    %v707 = vtanh.pop %v700
    %v708 = vmul.f32 %v706, %v613
    %710 = vrot.lane.b32.xlu0 %v707, 64
    %v711 = vpop.permute.xlu0 %710
    %v713 = vmul.f32 %v706, %v711
    %715 = vrot.lane.b32.xlu0 %v713, 32
    %v716 = vpop.permute.xlu0 %715
    %v718 = vadd.f32 %v708, %v716
    %v719 = vtanh.pop %v718
    %721 = vrot.lane.b32.xlu0 %v719, 64
    %v722 = vpop.permute.xlu0 %721
    %v724 = vmul.f32 %v706, %v722
    %726 = vrot.lane.b32.xlu0 %v724, 32
    %v727 = vpop.permute.xlu0 %726
    %s729 = scalar_lea.vmem [#allocation3], 4
    %730 = vst.msk [vmem:[%s729] sm:$0x3] %vm519, %v727
    %s731 = scalar_lea.vmem [#allocation2], 6
    %v732 = vld [vmem:[%s731] sm:$0x3]
    %v733 = vsel %vm416, %v727, 0
    %735 = vmatprep.subr.mxu0 0.0
    %736 = vmatpush1.msra.mxu0 0.0
    %737 = vmatprep.subr.mxu0 0.0
    %738 = vmatpush1.msra.mxu0 0.0
    %739 = vmatprep.subr.mxu0 0.0
    %740 = vmatpush1.msra.mxu0 0.0
    %741 = vmatprep.subr.mxu0 0.0
    %742 = vmatpush1.msra.mxu0 0.0
    %743 = vmatprep.subr.mxu0 0.0
    %744 = vmatpush1.msra.mxu0 0.0
    %745 = vmatprep.subr.mxu0 0.0
    %746 = vmatpush1.msra.mxu0 0.0
    %747 = vmatprep.subr.mxu0 0.0
    %748 = vmatpush1.msra.mxu0 0.0
    %749 = vmatprep.subr.mxu0 0.0
    %750 = vmatpush1.msra.mxu0 0.0
    %751 = vmatprep.subr.mxu0 0.0
    %752 = vmatpush1.msra.mxu0 0.0
    %753 = vmatprep.subr.mxu0 0.0
    %754 = vmatpush1.msra.mxu0 0.0
    %755 = vmatprep.subr.mxu0 0.0
    %756 = vmatpush1.msra.mxu0 0.0
    %757 = vmatprep.subr.mxu0 0.0
    %758 = vmatpush1.msra.mxu0 0.0
    %759 = vmatprep.subr.mxu0 0.0
    %760 = vmatpush1.msra.mxu0 %v31
    %761 = vmatprep.subr.mxu0 0.0
    %762 = vmatpush1.msra.mxu0 %v30
    %763 = vmatprep.subr.mxu0 0.0
    %764 = vmatpush1.msra.mxu0 %v29
    %765 = vmatprep.subr.mxu0 0.0
    %766 = vmatpush1.msra.mxu0 %v28
    %767 = vmatprep.subr.mxu0 0.0
    %768 = vmatpush2.msra.mxu0 0.0
    %769 = vmatprep.subr.mxu0 0.0
    %770 = vmatpush2.msra.mxu0 0.0
    %771 = vmatprep.subr.mxu0 0.0
    %772 = vmatpush2.msra.mxu0 0.0
    %773 = vmatprep.subr.mxu0 0.0
    %774 = vmatpush2.msra.mxu0 0.0
    %775 = vmatprep.subr.mxu0 0.0
    %776 = vmatpush2.msra.mxu0 0.0
    %777 = vmatprep.subr.mxu0 0.0
    %778 = vmatpush2.msra.mxu0 0.0
    %779 = vmatprep.subr.mxu0 0.0
    %780 = vmatpush2.msra.mxu0 0.0
    %781 = vmatprep.subr.mxu0 0.0
    %782 = vmatpush2.msra.mxu0 0.0
    %783 = vmatprep.subr.mxu0 0.0
    %784 = vmatpush2.msra.mxu0 0.0
    %785 = vmatprep.subr.mxu0 0.0
    %786 = vmatpush2.msra.mxu0 0.0
    %787 = vmatprep.subr.mxu0 0.0
    %788 = vmatpush2.msra.mxu0 0.0
    %789 = vmatprep.subr.mxu0 0.0
    %790 = vmatpush2.msra.mxu0 0.0
    %791 = vmatprep.subr.mxu0 0.0
    %792 = vmatpush2.msra.mxu0 0.0
    %793 = vmatprep.subr.mxu0 0.0
    %794 = vmatpush2.msra.mxu0 0.0
    %795 = vmatprep.subr.mxu0 0.0
    %796 = vmatpush2.msra.mxu0 0.0
    %797 = vmatprep.subr.mxu0 0.0
    %798 = vmatpush2.msra.mxu0 0.0
    %799 = vmatprep.mubr.f32.mxu0 0.0
    %800 = vmatmul.mubr.f32.gmra.mxu0 %v733
    %v801 = vpop.f32.mrf.mxu0
    %v802 = vadd.f32 0.0, %v801
    %v803 = vpop.f32.mrf.mxu0
    %804 = vdwg.mxu0
    %v805 = vadd.f32 %v732, %v802
    %v806 = vxor.u32 %v805, 2147483648
    %v807 = vmul.f32 %v806, 1.442695
    %v808 = vpow.pop %v807
    %v809 = vadd.f32 %v808, 1.0
    %v810 = vrcp.pop %v809
    %v811 = vmul.f32 1.0, %v810
    %v812 = vtanh.pop %v805
    %v813 = vmul.f32 %v811, %v718
    %815 = vrot.lane.b32.xlu0 %v812, 64
    %v816 = vpop.permute.xlu0 %815
    %v818 = vmul.f32 %v811, %v816
    %820 = vrot.lane.b32.xlu0 %v818, 32
    %v821 = vpop.permute.xlu0 %820
    %v823 = vadd.f32 %v813, %v821
    %v824 = vtanh.pop %v823
    %826 = vrot.lane.b32.xlu0 %v824, 64
    %v827 = vpop.permute.xlu0 %826
    %v829 = vmul.f32 %v811, %v827
    %831 = vrot.lane.b32.xlu0 %v829, 32
    %v832 = vpop.permute.xlu0 %831
    %s834 = scalar_lea.vmem [#allocation3], 6
    %835 = vst.msk [vmem:[%s834] sm:$0x3] %vm519, %v832
    %s836 = scalar_lea.vmem [#allocation2], 8
    %v837 = vld [vmem:[%s836] sm:$0x3]
    %v838 = vsel %vm416, %v832, 0
    %840 = vmatprep.subr.mxu0 0.0
    %841 = vmatpush1.msra.mxu0 0.0
    %842 = vmatprep.subr.mxu0 0.0
    %843 = vmatpush1.msra.mxu0 0.0
    %844 = vmatprep.subr.mxu0 0.0
    %845 = vmatpush1.msra.mxu0 0.0
    %846 = vmatprep.subr.mxu0 0.0
    %847 = vmatpush1.msra.mxu0 0.0
    %848 = vmatprep.subr.mxu0 0.0
    %849 = vmatpush1.msra.mxu0 0.0
    %850 = vmatprep.subr.mxu0 0.0
    %851 = vmatpush1.msra.mxu0 0.0
    %852 = vmatprep.subr.mxu0 0.0
    %853 = vmatpush1.msra.mxu0 0.0
    %854 = vmatprep.subr.mxu0 0.0
    %855 = vmatpush1.msra.mxu0 0.0
    %856 = vmatprep.subr.mxu0 0.0
    %857 = vmatpush1.msra.mxu0 0.0
    %858 = vmatprep.subr.mxu0 0.0
    %859 = vmatpush1.msra.mxu0 0.0
    %860 = vmatprep.subr.mxu0 0.0
    %861 = vmatpush1.msra.mxu0 0.0
    %862 = vmatprep.subr.mxu0 0.0
    %863 = vmatpush1.msra.mxu0 0.0
    %864 = vmatprep.subr.mxu0 0.0
    %865 = vmatpush1.msra.mxu0 %v31
    %866 = vmatprep.subr.mxu0 0.0
    %867 = vmatpush1.msra.mxu0 %v30
    %868 = vmatprep.subr.mxu0 0.0
    %869 = vmatpush1.msra.mxu0 %v29
    %870 = vmatprep.subr.mxu0 0.0
    %871 = vmatpush1.msra.mxu0 %v28
    %872 = vmatprep.subr.mxu0 0.0
    %873 = vmatpush2.msra.mxu0 0.0
    %874 = vmatprep.subr.mxu0 0.0
    %875 = vmatpush2.msra.mxu0 0.0
    %876 = vmatprep.subr.mxu0 0.0
    %877 = vmatpush2.msra.mxu0 0.0
    %878 = vmatprep.subr.mxu0 0.0
    %879 = vmatpush2.msra.mxu0 0.0
    %880 = vmatprep.subr.mxu0 0.0
    %881 = vmatpush2.msra.mxu0 0.0
    %882 = vmatprep.subr.mxu0 0.0
    %883 = vmatpush2.msra.mxu0 0.0
    %884 = vmatprep.subr.mxu0 0.0
    %885 = vmatpush2.msra.mxu0 0.0
    %886 = vmatprep.subr.mxu0 0.0
    %887 = vmatpush2.msra.mxu0 0.0
    %888 = vmatprep.subr.mxu0 0.0
    %889 = vmatpush2.msra.mxu0 0.0
    %890 = vmatprep.subr.mxu0 0.0
    %891 = vmatpush2.msra.mxu0 0.0
    %892 = vmatprep.subr.mxu0 0.0
    %893 = vmatpush2.msra.mxu0 0.0
    %894 = vmatprep.subr.mxu0 0.0
    %895 = vmatpush2.msra.mxu0 0.0
    %896 = vmatprep.subr.mxu0 0.0
    %897 = vmatpush2.msra.mxu0 0.0
    %898 = vmatprep.subr.mxu0 0.0
    %899 = vmatpush2.msra.mxu0 0.0
    %900 = vmatprep.subr.mxu0 0.0
    %901 = vmatpush2.msra.mxu0 0.0
    %902 = vmatprep.subr.mxu0 0.0
    %903 = vmatpush2.msra.mxu0 0.0
    %904 = vmatprep.mubr.f32.mxu0 0.0
    %905 = vmatmul.mubr.f32.gmra.mxu0 %v838
    %v906 = vpop.f32.mrf.mxu0
    %v907 = vadd.f32 0.0, %v906
    %v908 = vpop.f32.mrf.mxu0
    %909 = vdwg.mxu0
    %v910 = vadd.f32 %v837, %v907
    %v911 = vxor.u32 %v910, 2147483648
    %v912 = vmul.f32 %v911, 1.442695
    %v913 = vpow.pop %v912
    %v914 = vadd.f32 %v913, 1.0
    %v915 = vrcp.pop %v914
    %v916 = vmul.f32 1.0, %v915
    %v917 = vtanh.pop %v910
    %v918 = vmul.f32 %v916, %v823
    %920 = vrot.lane.b32.xlu0 %v917, 64
    %v921 = vpop.permute.xlu0 %920
    %v923 = vmul.f32 %v916, %v921
    %925 = vrot.lane.b32.xlu0 %v923, 32
    %v926 = vpop.permute.xlu0 %925
    %v928 = vadd.f32 %v918, %v926
    %v929 = vtanh.pop %v928
    %931 = vrot.lane.b32.xlu0 %v929, 64
    %v932 = vpop.permute.xlu0 %931
    %v934 = vmul.f32 %v916, %v932
    %936 = vrot.lane.b32.xlu0 %v934, 32
    %v937 = vpop.permute.xlu0 %936
    %s939 = scalar_lea.vmem [#allocation3], 8
    %940 = vst.msk [vmem:[%s939] sm:$0x3] %vm519, %v937
    %s941 = scalar_lea.vmem [#allocation2], 10
    %v942 = vld [vmem:[%s941] sm:$0x3]
    %v943 = vsel %vm416, %v937, 0
    %945 = vmatprep.subr.mxu0 0.0
    %946 = vmatpush1.msra.mxu0 0.0
    %947 = vmatprep.subr.mxu0 0.0
    %948 = vmatpush1.msra.mxu0 0.0
    %949 = vmatprep.subr.mxu0 0.0
    %950 = vmatpush1.msra.mxu0 0.0
    %951 = vmatprep.subr.mxu0 0.0
    %952 = vmatpush1.msra.mxu0 0.0
    %953 = vmatprep.subr.mxu0 0.0
    %954 = vmatpush1.msra.mxu0 0.0
    %955 = vmatprep.subr.mxu0 0.0
    %956 = vmatpush1.msra.mxu0 0.0
    %957 = vmatprep.subr.mxu0 0.0
    %958 = vmatpush1.msra.mxu0 0.0
    %959 = vmatprep.subr.mxu0 0.0
    %960 = vmatpush1.msra.mxu0 0.0
    %961 = vmatprep.subr.mxu0 0.0
    %962 = vmatpush1.msra.mxu0 0.0
    %963 = vmatprep.subr.mxu0 0.0
    %964 = vmatpush1.msra.mxu0 0.0
    %965 = vmatprep.subr.mxu0 0.0
    %966 = vmatpush1.msra.mxu0 0.0
    %967 = vmatprep.subr.mxu0 0.0
    %968 = vmatpush1.msra.mxu0 0.0
    %969 = vmatprep.subr.mxu0 0.0
    %970 = vmatpush1.msra.mxu0 %v31
    %971 = vmatprep.subr.mxu0 0.0
    %972 = vmatpush1.msra.mxu0 %v30
    %973 = vmatprep.subr.mxu0 0.0
    %974 = vmatpush1.msra.mxu0 %v29
    %975 = vmatprep.subr.mxu0 0.0
    %976 = vmatpush1.msra.mxu0 %v28
    %977 = vmatprep.subr.mxu0 0.0
    %978 = vmatpush2.msra.mxu0 0.0
    %979 = vmatprep.subr.mxu0 0.0
    %980 = vmatpush2.msra.mxu0 0.0
    %981 = vmatprep.subr.mxu0 0.0
    %982 = vmatpush2.msra.mxu0 0.0
    %983 = vmatprep.subr.mxu0 0.0
    %984 = vmatpush2.msra.mxu0 0.0
    %985 = vmatprep.subr.mxu0 0.0
    %986 = vmatpush2.msra.mxu0 0.0
    %987 = vmatprep.subr.mxu0 0.0
    %988 = vmatpush2.msra.mxu0 0.0
    %989 = vmatprep.subr.mxu0 0.0
    %990 = vmatpush2.msra.mxu0 0.0
    %991 = vmatprep.subr.mxu0 0.0
    %992 = vmatpush2.msra.mxu0 0.0
    %993 = vmatprep.subr.mxu0 0.0
    %994 = vmatpush2.msra.mxu0 0.0
    %995 = vmatprep.subr.mxu0 0.0
    %996 = vmatpush2.msra.mxu0 0.0
    %997 = vmatprep.subr.mxu0 0.0
    %998 = vmatpush2.msra.mxu0 0.0
    %999 = vmatprep.subr.mxu0 0.0
    %1000 = vmatpush2.msra.mxu0 0.0
    %1001 = vmatprep.subr.mxu0 0.0
    %1002 = vmatpush2.msra.mxu0 0.0
    %1003 = vmatprep.subr.mxu0 0.0
    %1004 = vmatpush2.msra.mxu0 0.0
    %1005 = vmatprep.subr.mxu0 0.0
    %1006 = vmatpush2.msra.mxu0 0.0
    %1007 = vmatprep.subr.mxu0 0.0
    %1008 = vmatpush2.msra.mxu0 0.0
    %1009 = vmatprep.mubr.f32.mxu0 0.0
    %1010 = vmatmul.mubr.f32.gmra.mxu0 %v943
    %v1011 = vpop.f32.mrf.mxu0
    %v1012 = vadd.f32 0.0, %v1011
    %v1013 = vpop.f32.mrf.mxu0
    %1014 = vdwg.mxu0
    %v1015 = vadd.f32 %v942, %v1012
    %v1016 = vxor.u32 %v1015, 2147483648
    %v1017 = vmul.f32 %v1016, 1.442695
    %v1018 = vpow.pop %v1017
    %v1019 = vadd.f32 %v1018, 1.0
    %v1020 = vrcp.pop %v1019
    %v1021 = vmul.f32 1.0, %v1020
    %v1022 = vtanh.pop %v1015
    %v1023 = vmul.f32 %v1021, %v928
    %1025 = vrot.lane.b32.xlu0 %v1022, 64
    %v1026 = vpop.permute.xlu0 %1025
    %v1028 = vmul.f32 %v1021, %v1026
    %1030 = vrot.lane.b32.xlu0 %v1028, 32
    %v1031 = vpop.permute.xlu0 %1030
    %v1033 = vadd.f32 %v1023, %v1031
    %v1034 = vtanh.pop %v1033
    %1036 = vrot.lane.b32.xlu0 %v1034, 64
    %v1037 = vpop.permute.xlu0 %1036
    %v1039 = vmul.f32 %v1021, %v1037
    %1041 = vrot.lane.b32.xlu0 %v1039, 32
    %v1042 = vpop.permute.xlu0 %1041
    %s1044 = scalar_lea.vmem [#allocation3], 10
    %1045 = vst.msk [vmem:[%s1044] sm:$0x3] %vm519, %v1042
    %s1046 = scalar_lea.vmem [#allocation2], 12
    %v1047 = vld [vmem:[%s1046] sm:$0x3]
    %v1048 = vsel %vm416, %v1042, 0
    %1050 = vmatprep.subr.mxu0 0.0
    %1051 = vmatpush1.msra.mxu0 0.0
    %1052 = vmatprep.subr.mxu0 0.0
    %1053 = vmatpush1.msra.mxu0 0.0
    %1054 = vmatprep.subr.mxu0 0.0
    %1055 = vmatpush1.msra.mxu0 0.0
    %1056 = vmatprep.subr.mxu0 0.0
    %1057 = vmatpush1.msra.mxu0 0.0
    %1058 = vmatprep.subr.mxu0 0.0
    %1059 = vmatpush1.msra.mxu0 0.0
    %1060 = vmatprep.subr.mxu0 0.0
    %1061 = vmatpush1.msra.mxu0 0.0
    %1062 = vmatprep.subr.mxu0 0.0
    %1063 = vmatpush1.msra.mxu0 0.0
    %1064 = vmatprep.subr.mxu0 0.0
    %1065 = vmatpush1.msra.mxu0 0.0
    %1066 = vmatprep.subr.mxu0 0.0
    %1067 = vmatpush1.msra.mxu0 0.0
    %1068 = vmatprep.subr.mxu0 0.0
    %1069 = vmatpush1.msra.mxu0 0.0
    %1070 = vmatprep.subr.mxu0 0.0
    %1071 = vmatpush1.msra.mxu0 0.0
    %1072 = vmatprep.subr.mxu0 0.0
    %1073 = vmatpush1.msra.mxu0 0.0
    %1074 = vmatprep.subr.mxu0 0.0
    %1075 = vmatpush1.msra.mxu0 %v31
    %1076 = vmatprep.subr.mxu0 0.0
    %1077 = vmatpush1.msra.mxu0 %v30
    %1078 = vmatprep.subr.mxu0 0.0
    %1079 = vmatpush1.msra.mxu0 %v29
    %1080 = vmatprep.subr.mxu0 0.0
    %1081 = vmatpush1.msra.mxu0 %v28
    %1082 = vmatprep.subr.mxu0 0.0
    %1083 = vmatpush2.msra.mxu0 0.0
    %1084 = vmatprep.subr.mxu0 0.0
    %1085 = vmatpush2.msra.mxu0 0.0
    %1086 = vmatprep.subr.mxu0 0.0
    %1087 = vmatpush2.msra.mxu0 0.0
    %1088 = vmatprep.subr.mxu0 0.0
    %1089 = vmatpush2.msra.mxu0 0.0
    %1090 = vmatprep.subr.mxu0 0.0
    %1091 = vmatpush2.msra.mxu0 0.0
    %1092 = vmatprep.subr.mxu0 0.0
    %1093 = vmatpush2.msra.mxu0 0.0
    %1094 = vmatprep.subr.mxu0 0.0
    %1095 = vmatpush2.msra.mxu0 0.0
    %1096 = vmatprep.subr.mxu0 0.0
    %1097 = vmatpush2.msra.mxu0 0.0
    %1098 = vmatprep.subr.mxu0 0.0
    %1099 = vmatpush2.msra.mxu0 0.0
    %1100 = vmatprep.subr.mxu0 0.0
    %1101 = vmatpush2.msra.mxu0 0.0
    %1102 = vmatprep.subr.mxu0 0.0
    %1103 = vmatpush2.msra.mxu0 0.0
    %1104 = vmatprep.subr.mxu0 0.0
    %1105 = vmatpush2.msra.mxu0 0.0
    %1106 = vmatprep.subr.mxu0 0.0
    %1107 = vmatpush2.msra.mxu0 0.0
    %1108 = vmatprep.subr.mxu0 0.0
    %1109 = vmatpush2.msra.mxu0 0.0
    %1110 = vmatprep.subr.mxu0 0.0
    %1111 = vmatpush2.msra.mxu0 0.0
    %1112 = vmatprep.subr.mxu0 0.0
    %1113 = vmatpush2.msra.mxu0 0.0
    %1114 = vmatprep.mubr.f32.mxu0 0.0
    %1115 = vmatmul.mubr.f32.gmra.mxu0 %v1048
    %v1116 = vpop.f32.mrf.mxu0
    %v1117 = vadd.f32 0.0, %v1116
    %v1118 = vpop.f32.mrf.mxu0
    %1119 = vdwg.mxu0
    %v1120 = vadd.f32 %v1047, %v1117
    %v1121 = vxor.u32 %v1120, 2147483648
    %v1122 = vmul.f32 %v1121, 1.442695
    %v1123 = vpow.pop %v1122
    %v1124 = vadd.f32 %v1123, 1.0
    %v1125 = vrcp.pop %v1124
    %v1126 = vmul.f32 1.0, %v1125
    %v1127 = vtanh.pop %v1120
    %v1128 = vmul.f32 %v1126, %v1033
    %1130 = vrot.lane.b32.xlu0 %v1127, 64
    %v1131 = vpop.permute.xlu0 %1130
    %v1133 = vmul.f32 %v1126, %v1131
    %1135 = vrot.lane.b32.xlu0 %v1133, 32
    %v1136 = vpop.permute.xlu0 %1135
    %v1138 = vadd.f32 %v1128, %v1136
    %v1139 = vtanh.pop %v1138
    %1141 = vrot.lane.b32.xlu0 %v1139, 64
    %v1142 = vpop.permute.xlu0 %1141
    %v1144 = vmul.f32 %v1126, %v1142
    %1146 = vrot.lane.b32.xlu0 %v1144, 32
    %v1147 = vpop.permute.xlu0 %1146
    %s1149 = scalar_lea.vmem [#allocation3], 12
    %1150 = vst.msk [vmem:[%s1149] sm:$0x3] %vm519, %v1147
    %s1151 = scalar_lea.vmem [#allocation2], 14
    %v1152 = vld [vmem:[%s1151] sm:$0x3]
    %v1153 = vsel %vm416, %v1147, 0
    %1155 = vmatprep.subr.mxu0 0.0
    %1156 = vmatpush1.msra.mxu0 0.0
    %1157 = vmatprep.subr.mxu0 0.0
    %1158 = vmatpush1.msra.mxu0 0.0
    %1159 = vmatprep.subr.mxu0 0.0
    %1160 = vmatpush1.msra.mxu0 0.0
    %1161 = vmatprep.subr.mxu0 0.0
    %1162 = vmatpush1.msra.mxu0 0.0
    %1163 = vmatprep.subr.mxu0 0.0
    %1164 = vmatpush1.msra.mxu0 0.0
    %1165 = vmatprep.subr.mxu0 0.0
    %1166 = vmatpush1.msra.mxu0 0.0
    %1167 = vmatprep.subr.mxu0 0.0
    %1168 = vmatpush1.msra.mxu0 0.0
    %1169 = vmatprep.subr.mxu0 0.0
    %1170 = vmatpush1.msra.mxu0 0.0
    %1171 = vmatprep.subr.mxu0 0.0
    %1172 = vmatpush1.msra.mxu0 0.0
    %1173 = vmatprep.subr.mxu0 0.0
    %1174 = vmatpush1.msra.mxu0 0.0
    %1175 = vmatprep.subr.mxu0 0.0
    %1176 = vmatpush1.msra.mxu0 0.0
    %1177 = vmatprep.subr.mxu0 0.0
    %1178 = vmatpush1.msra.mxu0 0.0
    %1179 = vmatprep.subr.mxu0 0.0
    %1180 = vmatpush1.msra.mxu0 %v31
    %1181 = vmatprep.subr.mxu0 0.0
    %1182 = vmatpush1.msra.mxu0 %v30
    %1183 = vmatprep.subr.mxu0 0.0
    %1184 = vmatpush1.msra.mxu0 %v29
    %1185 = vmatprep.subr.mxu0 0.0
    %1186 = vmatpush1.msra.mxu0 %v28
    %1187 = vmatprep.subr.mxu0 0.0
    %1188 = vmatpush2.msra.mxu0 0.0
    %1189 = vmatprep.subr.mxu0 0.0
    %1190 = vmatpush2.msra.mxu0 0.0
    %1191 = vmatprep.subr.mxu0 0.0
    %1192 = vmatpush2.msra.mxu0 0.0
    %1193 = vmatprep.subr.mxu0 0.0
    %1194 = vmatpush2.msra.mxu0 0.0
    %1195 = vmatprep.subr.mxu0 0.0
    %1196 = vmatpush2.msra.mxu0 0.0
    %1197 = vmatprep.subr.mxu0 0.0
    %1198 = vmatpush2.msra.mxu0 0.0
    %1199 = vmatprep.subr.mxu0 0.0
    %1200 = vmatpush2.msra.mxu0 0.0
    %1201 = vmatprep.subr.mxu0 0.0
    %1202 = vmatpush2.msra.mxu0 0.0
    %1203 = vmatprep.subr.mxu0 0.0
    %1204 = vmatpush2.msra.mxu0 0.0
    %1205 = vmatprep.subr.mxu0 0.0
    %1206 = vmatpush2.msra.mxu0 0.0
    %1207 = vmatprep.subr.mxu0 0.0
    %1208 = vmatpush2.msra.mxu0 0.0
    %1209 = vmatprep.subr.mxu0 0.0
    %1210 = vmatpush2.msra.mxu0 0.0
    %1211 = vmatprep.subr.mxu0 0.0
    %1212 = vmatpush2.msra.mxu0 0.0
    %1213 = vmatprep.subr.mxu0 0.0
    %1214 = vmatpush2.msra.mxu0 0.0
    %1215 = vmatprep.subr.mxu0 0.0
    %1216 = vmatpush2.msra.mxu0 0.0
    %1217 = vmatprep.subr.mxu0 0.0
    %1218 = vmatpush2.msra.mxu0 0.0
    %1219 = vmatprep.mubr.f32.mxu0 0.0
    %1220 = vmatmul.mubr.f32.gmra.mxu0 %v1153
    %v1221 = vpop.f32.mrf.mxu0
    %v1222 = vadd.f32 0.0, %v1221
    %v1223 = vpop.f32.mrf.mxu0
    %1224 = vdwg.mxu0
    %v1225 = vadd.f32 %v1152, %v1222
    %v1226 = vxor.u32 %v1225, 2147483648
    %v1227 = vmul.f32 %v1226, 1.442695
    %v1228 = vpow.pop %v1227
    %v1229 = vadd.f32 %v1228, 1.0
    %v1230 = vrcp.pop %v1229
    %v1231 = vmul.f32 1.0, %v1230
    %v1232 = vtanh.pop %v1225
    %v1233 = vmul.f32 %v1231, %v1138
    %1235 = vrot.lane.b32.xlu0 %v1232, 64
    %v1236 = vpop.permute.xlu0 %1235
    %v1238 = vmul.f32 %v1231, %v1236
    %1240 = vrot.lane.b32.xlu0 %v1238, 32
    %v1241 = vpop.permute.xlu0 %1240
    %v1243 = vadd.f32 %v1233, %v1241
    %v1244 = vtanh.pop %v1243
    %1246 = vrot.lane.b32.xlu0 %v1244, 64
    %v1247 = vpop.permute.xlu0 %1246
    %v1249 = vmul.f32 %v1231, %v1247
    %1251 = vrot.lane.b32.xlu0 %v1249, 32
    %v1252 = vpop.permute.xlu0 %1251
    %s1254 = scalar_lea.vmem [#allocation3], 14
    %1255 = vst.msk [vmem:[%s1254] sm:$0x3] %vm519, %v1252
    %v1256 = vld [vmem:[%s3] sm:$0xff]
    %v1257 = vld [vmem:[%s3 + $0x8] sm:$0xff]
    %v1258 = vld [vmem:[%s3 + $0x10] sm:$0xff]
    %v1259 = vld [vmem:[%s3 + $0x18] sm:$0xff]
    %v1260 = vld [vmem:[%s3 + $0x20] sm:$0xff]
    %v1261 = vld [vmem:[%s3 + $0x28] sm:$0xff]
    %v1262 = vld [vmem:[%s3 + $0x30] sm:$0xff]
    %v1263 = vld [vmem:[%s3 + $0x38] sm:$0xff]
    %v1264 = vld [vmem:[%s4] sm:$0xf]
    %v1265 = vld [vmem:[%s4 + $0x4] sm:$0xf]
    %v1266 = vld [vmem:[%s4 + $0x8] sm:$0xf]
    %v1267 = vld [vmem:[%s4 + $0xc] sm:$0xf]
    %v1268 = vld [vmem:[%s4 + $0x10] sm:$0xf]
    %v1269 = vld [vmem:[%s4 + $0x14] sm:$0xf]
    %v1270 = vld [vmem:[%s4 + $0x18] sm:$0xf]
    %v1271 = vld [vmem:[%s4 + $0x1c] sm:$0xf]
    %v1272 = vld [vmem:[%s4 + $0x20] sm:$0xf]
    %v1273 = vld [vmem:[%s4 + $0x24] sm:$0xf]
    %v1274 = vld [vmem:[%s4 + $0x28] sm:$0xf]
    %v1275 = vld [vmem:[%s4 + $0x2c] sm:$0xf]
    %v1276 = vld [vmem:[%s4 + $0x30] sm:$0xf]
    %v1277 = vld [vmem:[%s4 + $0x34] sm:$0xf]
    %v1278 = vld [vmem:[%s4 + $0x38] sm:$0xf]
    %v1279 = vld [vmem:[%s4 + $0x3c] sm:$0xf]
    %v1280 = vld [vmem:[%s4 + $0x40] sm:$0xf]
    %v1281 = vld [vmem:[%s4 + $0x44] sm:$0xf]
    %v1282 = vld [vmem:[%s4 + $0x48] sm:$0xf]
    %v1283 = vld [vmem:[%s4 + $0x4c] sm:$0xf]
    %v1284 = vld [vmem:[%s4 + $0x50] sm:$0xf]
    %v1285 = vld [vmem:[%s4 + $0x54] sm:$0xf]
    %v1286 = vld [vmem:[%s4 + $0x58] sm:$0xf]
    %v1287 = vld [vmem:[%s4 + $0x5c] sm:$0xf]
    %v1288 = vld [vmem:[%s4 + $0x60] sm:$0xf]
    %v1289 = vld [vmem:[%s4 + $0x64] sm:$0xf]
    %v1290 = vld [vmem:[%s4 + $0x68] sm:$0xf]
    %v1291 = vld [vmem:[%s4 + $0x6c] sm:$0xf]
    %v1292 = vld [vmem:[%s4 + $0x70] sm:$0xf]
    %v1293 = vld [vmem:[%s4 + $0x74] sm:$0xf]
    %v1294 = vld [vmem:[%s4 + $0x78] sm:$0xf]
    %v1295 = vld [vmem:[%s4 + $0x7c] sm:$0xf]
    %v1296 = vld [vmem:[%s4 + $0x80] sm:$0xf]
    %v1297 = vld [vmem:[%s4 + $0x84] sm:$0xf]
    %v1298 = vld [vmem:[%s4 + $0x88] sm:$0xf]
    %v1299 = vld [vmem:[%s4 + $0x8c] sm:$0xf]
    %v1300 = vld [vmem:[%s4 + $0x90] sm:$0xf]
    %v1301 = vld [vmem:[%s4 + $0x94] sm:$0xf]
    %v1302 = vld [vmem:[%s4 + $0x98] sm:$0xf]
    %v1303 = vld [vmem:[%s4 + $0x9c] sm:$0xf]
    %v1304 = vld [vmem:[%s4 + $0xa0] sm:$0xf]
    %v1305 = vld [vmem:[%s4 + $0xa4] sm:$0xf]
    %v1306 = vld [vmem:[%s4 + $0xa8] sm:$0xf]
    %v1307 = vld [vmem:[%s4 + $0xac] sm:$0xf]
    %v1308 = vld [vmem:[%s4 + $0xb0] sm:$0xf]
    %v1309 = vld [vmem:[%s4 + $0xb4] sm:$0xf]
    %v1310 = vld [vmem:[%s4 + $0xb8] sm:$0xf]
    %v1311 = vld [vmem:[%s4 + $0xbc] sm:$0xf]
    %v1312 = vld [vmem:[%s4 + $0xc0] sm:$0xf]
    %v1313 = vld [vmem:[%s4 + $0xc4] sm:$0xf]
    %v1314 = vld [vmem:[%s4 + $0xc8] sm:$0xf]
    %v1315 = vld [vmem:[%s4 + $0xcc] sm:$0xf]
    %v1316 = vld [vmem:[%s4 + $0xd0] sm:$0xf]
    %v1317 = vld [vmem:[%s4 + $0xd4] sm:$0xf]
    %v1318 = vld [vmem:[%s4 + $0xd8] sm:$0xf]
    %v1319 = vld [vmem:[%s4 + $0xdc] sm:$0xf]
    %v1320 = vld [vmem:[%s4 + $0xe0] sm:$0xf]
    %v1321 = vld [vmem:[%s4 + $0xe4] sm:$0xf]
    %v1322 = vld [vmem:[%s4 + $0xe8] sm:$0xf]
    %v1323 = vld [vmem:[%s4 + $0xec] sm:$0xf]
    %v1324 = vld [vmem:[%s4 + $0xf0] sm:$0xf]
    %v1325 = vld [vmem:[%s4 + $0xf4] sm:$0xf]
    %v1326 = vld [vmem:[%s4 + $0xf8] sm:$0xf]
    %v1327 = vld [vmem:[%s4 + $0xfc] sm:$0xf]
    %v1328 = vld [vmem:[%s4 + $0x100] sm:$0xf]
    %v1329 = vld [vmem:[%s4 + $0x104] sm:$0xf]
    %v1330 = vld [vmem:[%s4 + $0x108] sm:$0xf]
    %v1331 = vld [vmem:[%s4 + $0x10c] sm:$0xf]
    %v1332 = vld [vmem:[%s4 + $0x110] sm:$0xf]
    %v1333 = vld [vmem:[%s4 + $0x114] sm:$0xf]
    %v1334 = vld [vmem:[%s4 + $0x118] sm:$0xf]
    %v1335 = vld [vmem:[%s4 + $0x11c] sm:$0xf]
    %v1336 = vld [vmem:[%s4 + $0x120] sm:$0xf]
    %v1337 = vld [vmem:[%s4 + $0x124] sm:$0xf]
    %v1338 = vld [vmem:[%s4 + $0x128] sm:$0xf]
    %v1339 = vld [vmem:[%s4 + $0x12c] sm:$0xf]
    %v1340 = vld [vmem:[%s4 + $0x130] sm:$0xf]
    %v1341 = vld [vmem:[%s4 + $0x134] sm:$0xf]
    %v1342 = vld [vmem:[%s4 + $0x138] sm:$0xf]
    %v1343 = vld [vmem:[%s4 + $0x13c] sm:$0xf]
    %v1344 = vld [vmem:[%s4 + $0x140] sm:$0xf]
    %v1345 = vld [vmem:[%s4 + $0x144] sm:$0xf]
    %v1346 = vld [vmem:[%s4 + $0x148] sm:$0xf]
    %v1347 = vld [vmem:[%s4 + $0x14c] sm:$0xf]
    %v1348 = vld [vmem:[%s4 + $0x150] sm:$0xf]
    %v1349 = vld [vmem:[%s4 + $0x154] sm:$0xf]
    %v1350 = vld [vmem:[%s4 + $0x158] sm:$0xf]
    %v1351 = vld [vmem:[%s4 + $0x15c] sm:$0xf]
    %v1352 = vld [vmem:[%s4 + $0x160] sm:$0xf]
    %v1353 = vld [vmem:[%s4 + $0x164] sm:$0xf]
    %v1354 = vld [vmem:[%s4 + $0x168] sm:$0xf]
    %v1355 = vld [vmem:[%s4 + $0x16c] sm:$0xf]
    %v1356 = vld [vmem:[%s4 + $0x170] sm:$0xf]
    %v1357 = vld [vmem:[%s4 + $0x174] sm:$0xf]
    %v1358 = vld [vmem:[%s4 + $0x178] sm:$0xf]
    %v1359 = vld [vmem:[%s4 + $0x17c] sm:$0xf]
    %v1360 = vld [vmem:[%s4 + $0x180] sm:$0xf]
    %v1361 = vld [vmem:[%s4 + $0x184] sm:$0xf]
    %v1362 = vld [vmem:[%s4 + $0x188] sm:$0xf]
    %v1363 = vld [vmem:[%s4 + $0x18c] sm:$0xf]
    %v1364 = vld [vmem:[%s4 + $0x190] sm:$0xf]
    %v1365 = vld [vmem:[%s4 + $0x194] sm:$0xf]
    %v1366 = vld [vmem:[%s4 + $0x198] sm:$0xf]
    %v1367 = vld [vmem:[%s4 + $0x19c] sm:$0xf]
    %v1368 = vld [vmem:[%s4 + $0x1a0] sm:$0xf]
    %v1369 = vld [vmem:[%s4 + $0x1a4] sm:$0xf]
    %v1370 = vld [vmem:[%s4 + $0x1a8] sm:$0xf]
    %v1371 = vld [vmem:[%s4 + $0x1ac] sm:$0xf]
    %v1372 = vld [vmem:[%s4 + $0x1b0] sm:$0xf]
    %v1373 = vld [vmem:[%s4 + $0x1b4] sm:$0xf]
    %v1374 = vld [vmem:[%s4 + $0x1b8] sm:$0xf]
    %v1375 = vld [vmem:[%s4 + $0x1bc] sm:$0xf]
    %v1376 = vld [vmem:[%s4 + $0x1c0] sm:$0xf]
    %v1377 = vld [vmem:[%s4 + $0x1c4] sm:$0xf]
    %v1378 = vld [vmem:[%s4 + $0x1c8] sm:$0xf]
    %v1379 = vld [vmem:[%s4 + $0x1cc] sm:$0xf]
    %v1380 = vld [vmem:[%s4 + $0x1d0] sm:$0xf]
    %v1381 = vld [vmem:[%s4 + $0x1d4] sm:$0xf]
    %v1382 = vld [vmem:[%s4 + $0x1d8] sm:$0xf]
    %v1383 = vld [vmem:[%s4 + $0x1dc] sm:$0xf]
    %v1384 = vld [vmem:[%s4 + $0x1e0] sm:$0xf]
    %v1385 = vld [vmem:[%s4 + $0x1e4] sm:$0xf]
    %v1386 = vld [vmem:[%s4 + $0x1e8] sm:$0xf]
    %v1387 = vld [vmem:[%s4 + $0x1ec] sm:$0xf]
    %v1388 = vld [vmem:[%s4 + $0x1f0] sm:$0xf]
    %v1389 = vld [vmem:[%s4 + $0x1f4] sm:$0xf]
    %v1390 = vld [vmem:[%s4 + $0x1f8] sm:$0xf]
    %v1391 = vld [vmem:[%s4 + $0x1fc] sm:$0xf]
    %v1392 = vld [vmem:[%s4 + $0x200] sm:$0xf]
    %v1393 = vld [vmem:[%s4 + $0x204] sm:$0xf]
    %v1394 = vld [vmem:[%s4 + $0x208] sm:$0xf]
    %v1395 = vld [vmem:[%s4 + $0x20c] sm:$0xf]
    %v1396 = vld [vmem:[%s4 + $0x210] sm:$0xf]
    %v1397 = vld [vmem:[%s4 + $0x214] sm:$0xf]
    %v1398 = vld [vmem:[%s4 + $0x218] sm:$0xf]
    %v1399 = vld [vmem:[%s4 + $0x21c] sm:$0xf]
    %v1400 = vld [vmem:[%s4 + $0x220] sm:$0xf]
    %v1401 = vld [vmem:[%s4 + $0x224] sm:$0xf]
    %v1402 = vld [vmem:[%s4 + $0x228] sm:$0xf]
    %v1403 = vld [vmem:[%s4 + $0x22c] sm:$0xf]
    %v1404 = vld [vmem:[%s4 + $0x230] sm:$0xf]
    %v1405 = vld [vmem:[%s4 + $0x234] sm:$0xf]
    %v1406 = vld [vmem:[%s4 + $0x238] sm:$0xf]
    %v1407 = vld [vmem:[%s4 + $0x23c] sm:$0xf]
    %v1408 = vld [vmem:[%s4 + $0x240] sm:$0xf]
    %v1409 = vld [vmem:[%s4 + $0x244] sm:$0xf]
    %v1410 = vld [vmem:[%s4 + $0x248] sm:$0xf]
    %v1411 = vld [vmem:[%s4 + $0x24c] sm:$0xf]
    %v1412 = vld [vmem:[%s4 + $0x250] sm:$0xf]
    %v1413 = vld [vmem:[%s4 + $0x254] sm:$0xf]
    %v1414 = vld [vmem:[%s4 + $0x258] sm:$0xf]
    %v1415 = vld [vmem:[%s4 + $0x25c] sm:$0xf]
    %v1416 = vld [vmem:[%s4 + $0x260] sm:$0xf]
    %v1417 = vld [vmem:[%s4 + $0x264] sm:$0xf]
    %v1418 = vld [vmem:[%s4 + $0x268] sm:$0xf]
    %v1419 = vld [vmem:[%s4 + $0x26c] sm:$0xf]
    %v1420 = vld [vmem:[%s4 + $0x270] sm:$0xf]
    %v1421 = vld [vmem:[%s4 + $0x274] sm:$0xf]
    %v1422 = vld [vmem:[%s4 + $0x278] sm:$0xf]
    %v1423 = vld [vmem:[%s4 + $0x27c] sm:$0xf]
    %v1424 = vld [vmem:[%s4 + $0x280] sm:$0xf]
    %v1425 = vld [vmem:[%s4 + $0x284] sm:$0xf]
    %v1426 = vld [vmem:[%s4 + $0x288] sm:$0xf]
    %v1427 = vld [vmem:[%s4 + $0x28c] sm:$0xf]
    %v1428 = vld [vmem:[%s4 + $0x290] sm:$0xf]
    %v1429 = vld [vmem:[%s4 + $0x294] sm:$0xf]
    %v1430 = vld [vmem:[%s4 + $0x298] sm:$0xf]
    %v1431 = vld [vmem:[%s4 + $0x29c] sm:$0xf]
    %v1432 = vld [vmem:[%s4 + $0x2a0] sm:$0xf]
    %v1433 = vld [vmem:[%s4 + $0x2a4] sm:$0xf]
    %v1434 = vld [vmem:[%s4 + $0x2a8] sm:$0xf]
    %v1435 = vld [vmem:[%s4 + $0x2ac] sm:$0xf]
    %v1436 = vld [vmem:[%s4 + $0x2b0] sm:$0xf]
    %v1437 = vld [vmem:[%s4 + $0x2b4] sm:$0xf]
    %v1438 = vld [vmem:[%s4 + $0x2b8] sm:$0xf]
    %v1439 = vld [vmem:[%s4 + $0x2bc] sm:$0xf]
    %v1440 = vld [vmem:[%s4 + $0x2c0] sm:$0xf]
    %v1441 = vld [vmem:[%s4 + $0x2c4] sm:$0xf]
    %v1442 = vld [vmem:[%s4 + $0x2c8] sm:$0xf]
    %v1443 = vld [vmem:[%s4 + $0x2cc] sm:$0xf]
    %v1444 = vld [vmem:[%s4 + $0x2d0] sm:$0xf]
    %v1445 = vld [vmem:[%s4 + $0x2d4] sm:$0xf]
    %v1446 = vld [vmem:[%s4 + $0x2d8] sm:$0xf]
    %v1447 = vld [vmem:[%s4 + $0x2dc] sm:$0xf]
    %v1448 = vld [vmem:[%s4 + $0x2e0] sm:$0xf]
    %v1449 = vld [vmem:[%s4 + $0x2e4] sm:$0xf]
    %v1450 = vld [vmem:[%s4 + $0x2e8] sm:$0xf]
    %v1451 = vld [vmem:[%s4 + $0x2ec] sm:$0xf]
    %v1452 = vld [vmem:[%s4 + $0x2f0] sm:$0xf]
    %v1453 = vld [vmem:[%s4 + $0x2f4] sm:$0xf]
    %v1454 = vld [vmem:[%s4 + $0x2f8] sm:$0xf]
    %v1455 = vld [vmem:[%s4 + $0x2fc] sm:$0xf]
    %v1456 = vld [vmem:[%s4 + $0x300] sm:$0xf]
    %v1457 = vld [vmem:[%s4 + $0x304] sm:$0xf]
    %v1458 = vld [vmem:[%s4 + $0x308] sm:$0xf]
    %v1459 = vld [vmem:[%s4 + $0x30c] sm:$0xf]
    %v1460 = vld [vmem:[%s4 + $0x310] sm:$0xf]
    %v1461 = vld [vmem:[%s4 + $0x314] sm:$0xf]
    %v1462 = vld [vmem:[%s4 + $0x318] sm:$0xf]
    %v1463 = vld [vmem:[%s4 + $0x31c] sm:$0xf]
    %v1464 = vld [vmem:[%s4 + $0x320] sm:$0xf]
    %v1465 = vld [vmem:[%s4 + $0x324] sm:$0xf]
    %v1466 = vld [vmem:[%s4 + $0x328] sm:$0xf]
    %v1467 = vld [vmem:[%s4 + $0x32c] sm:$0xf]
    %v1468 = vld [vmem:[%s4 + $0x330] sm:$0xf]
    %v1469 = vld [vmem:[%s4 + $0x334] sm:$0xf]
    %v1470 = vld [vmem:[%s4 + $0x338] sm:$0xf]
    %v1471 = vld [vmem:[%s4 + $0x33c] sm:$0xf]
    %v1472 = vld [vmem:[%s4 + $0x340] sm:$0xf]
    %v1473 = vld [vmem:[%s4 + $0x344] sm:$0xf]
    %v1474 = vld [vmem:[%s4 + $0x348] sm:$0xf]
    %v1475 = vld [vmem:[%s4 + $0x34c] sm:$0xf]
    %v1476 = vld [vmem:[%s4 + $0x350] sm:$0xf]
    %v1477 = vld [vmem:[%s4 + $0x354] sm:$0xf]
    %v1478 = vld [vmem:[%s4 + $0x358] sm:$0xf]
    %v1479 = vld [vmem:[%s4 + $0x35c] sm:$0xf]
    %v1480 = vld [vmem:[%s4 + $0x360] sm:$0xf]
    %v1481 = vld [vmem:[%s4 + $0x364] sm:$0xf]
    %v1482 = vld [vmem:[%s4 + $0x368] sm:$0xf]
    %v1483 = vld [vmem:[%s4 + $0x36c] sm:$0xf]
    %v1484 = vld [vmem:[%s4 + $0x370] sm:$0xf]
    %v1485 = vld [vmem:[%s4 + $0x374] sm:$0xf]
    %v1486 = vld [vmem:[%s4 + $0x378] sm:$0xf]
    %v1487 = vld [vmem:[%s4 + $0x37c] sm:$0xf]
    %v1488 = vld [vmem:[%s4 + $0x380] sm:$0xf]
    %v1489 = vld [vmem:[%s4 + $0x384] sm:$0xf]
    %v1490 = vld [vmem:[%s4 + $0x388] sm:$0xf]
    %v1491 = vld [vmem:[%s4 + $0x38c] sm:$0xf]
    %v1492 = vld [vmem:[%s4 + $0x390] sm:$0xf]
    %v1493 = vld [vmem:[%s4 + $0x394] sm:$0xf]
    %v1494 = vld [vmem:[%s4 + $0x398] sm:$0xf]
    %v1495 = vld [vmem:[%s4 + $0x39c] sm:$0xf]
    %v1496 = vld [vmem:[%s4 + $0x3a0] sm:$0xf]
    %v1497 = vld [vmem:[%s4 + $0x3a4] sm:$0xf]
    %v1498 = vld [vmem:[%s4 + $0x3a8] sm:$0xf]
    %v1499 = vld [vmem:[%s4 + $0x3ac] sm:$0xf]
    %v1500 = vld [vmem:[%s4 + $0x3b0] sm:$0xf]
    %v1501 = vld [vmem:[%s4 + $0x3b4] sm:$0xf]
    %v1502 = vld [vmem:[%s4 + $0x3b8] sm:$0xf]
    %v1503 = vld [vmem:[%s4 + $0x3bc] sm:$0xf]
    %v1504 = vld [vmem:[%s4 + $0x3c0] sm:$0xf]
    %v1505 = vld [vmem:[%s4 + $0x3c4] sm:$0xf]
    %v1506 = vld [vmem:[%s4 + $0x3c8] sm:$0xf]
    %v1507 = vld [vmem:[%s4 + $0x3cc] sm:$0xf]
    %v1508 = vld [vmem:[%s4 + $0x3d0] sm:$0xf]
    %v1509 = vld [vmem:[%s4 + $0x3d4] sm:$0xf]
    %v1510 = vld [vmem:[%s4 + $0x3d8] sm:$0xf]
    %v1511 = vld [vmem:[%s4 + $0x3dc] sm:$0xf]
    %v1512 = vld [vmem:[%s4 + $0x3e0] sm:$0xf]
    %v1513 = vld [vmem:[%s4 + $0x3e4] sm:$0xf]
    %v1514 = vld [vmem:[%s4 + $0x3e8] sm:$0xf]
    %v1515 = vld [vmem:[%s4 + $0x3ec] sm:$0xf]
    %v1516 = vld [vmem:[%s4 + $0x3f0] sm:$0xf]
    %v1517 = vld [vmem:[%s4 + $0x3f4] sm:$0xf]
    %v1518 = vld [vmem:[%s4 + $0x3f8] sm:$0xf]
    %v1519 = vld [vmem:[%s4 + $0x3fc] sm:$0xf]
    %v1520 = vld [vmem:[%s5] sm:$0x1]
    %v1522 = vlaneseq
    %v1523 = vshrl.u32 %v1522, 7
    %v1524 = vsub.s32 0, %v1523
    %v1525 = vrot.slane %v1520, %v1524
    %v1535 = vcombine.low %v1256, %v1260
    %v1536 = vcombine.high %v1256, %v1260
    %v1538 = vunpack.c.l.s4 1983009808
    %v1539 = vunpack.c.0.s8 %v1538
    %v1540 = vlaneseq
    %v1541 = vshrl.u32 %v1540, 7
    %v1542 = vsub.s32 %v1539, %v1541
    %v1543 = vrot.slane %v1535, %v1542
    %v1545 = vunpack.c.l.s4 1983009808
    %v1546 = vunpack.c.0.s8 %v1545
    %v1547 = vlaneseq
    %v1548 = vshrl.u32 %v1547, 7
    %v1549 = vsub.s32 %v1546, %v1548
    %v1550 = vrot.slane %v1536, %v1549
    %v1551 = vcombine.high %v1543, %v1543
    %v1552 = vcombine.high %v1550, %v1550
    %v1553 = vcombine.low %v1257, %v1261
    %v1554 = vcombine.high %v1257, %v1261
    %v1556 = vunpack.c.l.s4 1983009808
    %v1557 = vunpack.c.0.s8 %v1556
    %v1558 = vlaneseq
    %v1559 = vshrl.u32 %v1558, 7
    %v1560 = vsub.s32 %v1557, %v1559
    %v1561 = vrot.slane %v1553, %v1560
    %v1563 = vunpack.c.l.s4 1983009808
    %v1564 = vunpack.c.0.s8 %v1563
    %v1565 = vlaneseq
    %v1566 = vshrl.u32 %v1565, 7
    %v1567 = vsub.s32 %v1564, %v1566
    %v1568 = vrot.slane %v1554, %v1567
    %v1569 = vcombine.high %v1561, %v1561
    %v1570 = vcombine.high %v1568, %v1568
    %v1571 = vcombine.low %v1258, %v1262
    %v1572 = vcombine.high %v1258, %v1262
    %v1574 = vunpack.c.l.s4 1983009808
    %v1575 = vunpack.c.0.s8 %v1574
    %v1576 = vlaneseq
    %v1577 = vshrl.u32 %v1576, 7
    %v1578 = vsub.s32 %v1575, %v1577
    %v1579 = vrot.slane %v1571, %v1578
    %v1581 = vunpack.c.l.s4 1983009808
    %v1582 = vunpack.c.0.s8 %v1581
    %v1583 = vlaneseq
    %v1584 = vshrl.u32 %v1583, 7
    %v1585 = vsub.s32 %v1582, %v1584
    %v1586 = vrot.slane %v1572, %v1585
    %v1587 = vcombine.high %v1579, %v1579
    %v1588 = vcombine.high %v1586, %v1586
    %v1589 = vcombine.low %v1259, %v1263
    %v1590 = vcombine.high %v1259, %v1263
    %v1592 = vunpack.c.l.s4 1983009808
    %v1593 = vunpack.c.0.s8 %v1592
    %v1594 = vlaneseq
    %v1595 = vshrl.u32 %v1594, 7
    %v1596 = vsub.s32 %v1593, %v1595
    %v1597 = vrot.slane %v1589, %v1596
    %v1599 = vunpack.c.l.s4 1983009808
    %v1600 = vunpack.c.0.s8 %v1599
    %v1601 = vlaneseq
    %v1602 = vshrl.u32 %v1601, 7
    %v1603 = vsub.s32 %v1600, %v1602
    %v1604 = vrot.slane %v1590, %v1603
    %v1605 = vcombine.high %v1597, %v1597
    %v1606 = vcombine.high %v1604, %v1604
    %v1879 = vunpack.c.l.b16 %v1264
    %v1880 = vunpack.c.l.b16 %v1265
    %v1881 = vunpack.c.l.b16 %v1266
    %v1882 = vunpack.c.l.b16 %v1267
    %v1883 = vunpack.c.l.b16 %v1268
    %v1884 = vunpack.c.l.b16 %v1269
    %v1885 = vunpack.c.l.b16 %v1270
    %v1886 = vunpack.c.l.b16 %v1271
    %v1887 = vunpack.c.l.b16 %v1272
    %v1888 = vunpack.c.l.b16 %v1273
    %v1889 = vunpack.c.l.b16 %v1274
    %v1890 = vunpack.c.l.b16 %v1275
    %v1891 = vunpack.c.l.b16 %v1276
    %v1892 = vunpack.c.l.b16 %v1277
    %v1893 = vunpack.c.l.b16 %v1278
    %v1894 = vunpack.c.l.b16 %v1279
    %v1895 = vunpack.c.l.b16 %v1280
    %v1896 = vunpack.c.l.b16 %v1281
    %v1897 = vunpack.c.l.b16 %v1282
    %v1898 = vunpack.c.l.b16 %v1283
    %v1899 = vunpack.c.l.b16 %v1284
    %v1900 = vunpack.c.l.b16 %v1285
    %v1901 = vunpack.c.l.b16 %v1286
    %v1902 = vunpack.c.l.b16 %v1287
    %v1903 = vunpack.c.l.b16 %v1288
    %v1904 = vunpack.c.l.b16 %v1289
    %v1905 = vunpack.c.l.b16 %v1290
    %v1906 = vunpack.c.l.b16 %v1291
    %v1907 = vunpack.c.l.b16 %v1292
    %v1908 = vunpack.c.l.b16 %v1293
    %v1909 = vunpack.c.l.b16 %v1294
    %v1910 = vunpack.c.l.b16 %v1295
    %v1911 = vunpack.c.l.b16 %v1296
    %v1912 = vunpack.c.l.b16 %v1297
    %v1913 = vunpack.c.l.b16 %v1298
    %v1914 = vunpack.c.l.b16 %v1299
    %v1915 = vunpack.c.l.b16 %v1300
    %v1916 = vunpack.c.l.b16 %v1301
    %v1917 = vunpack.c.l.b16 %v1302
    %v1918 = vunpack.c.l.b16 %v1303
    %v1919 = vunpack.c.l.b16 %v1304
    %v1920 = vunpack.c.l.b16 %v1305
    %v1921 = vunpack.c.l.b16 %v1306
    %v1922 = vunpack.c.l.b16 %v1307
    %v1923 = vunpack.c.l.b16 %v1308
    %v1924 = vunpack.c.l.b16 %v1309
    %v1925 = vunpack.c.l.b16 %v1310
    %v1926 = vunpack.c.l.b16 %v1311
    %v1927 = vunpack.c.l.b16 %v1312
    %v1928 = vunpack.c.l.b16 %v1313
    %v1929 = vunpack.c.l.b16 %v1314
    %v1930 = vunpack.c.l.b16 %v1315
    %v1931 = vunpack.c.l.b16 %v1316
    %v1932 = vunpack.c.l.b16 %v1317
    %v1933 = vunpack.c.l.b16 %v1318
    %v1934 = vunpack.c.l.b16 %v1319
    %v1935 = vunpack.c.l.b16 %v1320
    %v1936 = vunpack.c.l.b16 %v1321
    %v1937 = vunpack.c.l.b16 %v1322
    %v1938 = vunpack.c.l.b16 %v1323
    %v1939 = vunpack.c.l.b16 %v1324
    %v1940 = vunpack.c.l.b16 %v1325
    %v1941 = vunpack.c.l.b16 %v1326
    %v1942 = vunpack.c.l.b16 %v1327
    %v1943 = vunpack.c.l.b16 %v1328
    %v1944 = vunpack.c.l.b16 %v1329
    %v1945 = vunpack.c.l.b16 %v1330
    %v1946 = vunpack.c.l.b16 %v1331
    %v1947 = vunpack.c.l.b16 %v1332
    %v1948 = vunpack.c.l.b16 %v1333
    %v1949 = vunpack.c.l.b16 %v1334
    %v1950 = vunpack.c.l.b16 %v1335
    %v1951 = vunpack.c.l.b16 %v1336
    %v1952 = vunpack.c.l.b16 %v1337
    %v1953 = vunpack.c.l.b16 %v1338
    %v1954 = vunpack.c.l.b16 %v1339
    %v1955 = vunpack.c.l.b16 %v1340
    %v1956 = vunpack.c.l.b16 %v1341
    %v1957 = vunpack.c.l.b16 %v1342
    %v1958 = vunpack.c.l.b16 %v1343
    %v1959 = vunpack.c.l.b16 %v1344
    %v1960 = vunpack.c.l.b16 %v1345
    %v1961 = vunpack.c.l.b16 %v1346
    %v1962 = vunpack.c.l.b16 %v1347
    %v1963 = vunpack.c.l.b16 %v1348
    %v1964 = vunpack.c.l.b16 %v1349
    %v1965 = vunpack.c.l.b16 %v1350
    %v1966 = vunpack.c.l.b16 %v1351
    %v1967 = vunpack.c.l.b16 %v1352
    %v1968 = vunpack.c.l.b16 %v1353
    %v1969 = vunpack.c.l.b16 %v1354
    %v1970 = vunpack.c.l.b16 %v1355
    %v1971 = vunpack.c.l.b16 %v1356
    %v1972 = vunpack.c.l.b16 %v1357
    %v1973 = vunpack.c.l.b16 %v1358
    %v1974 = vunpack.c.l.b16 %v1359
    %v1975 = vunpack.c.l.b16 %v1360
    %v1976 = vunpack.c.l.b16 %v1361
    %v1977 = vunpack.c.l.b16 %v1362
    %v1978 = vunpack.c.l.b16 %v1363
    %v1979 = vunpack.c.l.b16 %v1364
    %v1980 = vunpack.c.l.b16 %v1365
    %v1981 = vunpack.c.l.b16 %v1366
    %v1982 = vunpack.c.l.b16 %v1367
    %v1983 = vunpack.c.l.b16 %v1368
    %v1984 = vunpack.c.l.b16 %v1369
    %v1985 = vunpack.c.l.b16 %v1370
    %v1986 = vunpack.c.l.b16 %v1371
    %v1987 = vunpack.c.l.b16 %v1372
    %v1988 = vunpack.c.l.b16 %v1373
    %v1989 = vunpack.c.l.b16 %v1374
    %v1990 = vunpack.c.l.b16 %v1375
    %v1991 = vunpack.c.l.b16 %v1376
    %v1992 = vunpack.c.l.b16 %v1377
    %v1993 = vunpack.c.l.b16 %v1378
    %v1994 = vunpack.c.l.b16 %v1379
    %v1995 = vunpack.c.l.b16 %v1380
    %v1996 = vunpack.c.l.b16 %v1381
    %v1997 = vunpack.c.l.b16 %v1382
    %v1998 = vunpack.c.l.b16 %v1383
    %v1999 = vunpack.c.l.b16 %v1384
    %v2000 = vunpack.c.l.b16 %v1385
    %v2001 = vunpack.c.l.b16 %v1386
    %v2002 = vunpack.c.l.b16 %v1387
    %v2003 = vunpack.c.l.b16 %v1388
    %v2004 = vunpack.c.l.b16 %v1389
    %v2005 = vunpack.c.l.b16 %v1390
    %v2006 = vunpack.c.l.b16 %v1391
    %v2007 = vunpack.c.l.b16 %v1392
    %v2008 = vunpack.c.l.b16 %v1393
    %v2009 = vunpack.c.l.b16 %v1394
    %v2010 = vunpack.c.l.b16 %v1395
    %v2011 = vunpack.c.l.b16 %v1396
    %v2012 = vunpack.c.l.b16 %v1397
    %v2013 = vunpack.c.l.b16 %v1398
    %v2014 = vunpack.c.l.b16 %v1399
    %v2015 = vunpack.c.l.b16 %v1400
    %v2016 = vunpack.c.l.b16 %v1401
    %v2017 = vunpack.c.l.b16 %v1402
    %v2018 = vunpack.c.l.b16 %v1403
    %v2019 = vunpack.c.l.b16 %v1404
    %v2020 = vunpack.c.l.b16 %v1405
    %v2021 = vunpack.c.l.b16 %v1406
    %v2022 = vunpack.c.l.b16 %v1407
    %v2023 = vunpack.c.l.b16 %v1408
    %v2024 = vunpack.c.l.b16 %v1409
    %v2025 = vunpack.c.l.b16 %v1410
    %v2026 = vunpack.c.l.b16 %v1411
    %v2027 = vunpack.c.l.b16 %v1412
    %v2028 = vunpack.c.l.b16 %v1413
    %v2029 = vunpack.c.l.b16 %v1414
    %v2030 = vunpack.c.l.b16 %v1415
    %v2031 = vunpack.c.l.b16 %v1416
    %v2032 = vunpack.c.l.b16 %v1417
    %v2033 = vunpack.c.l.b16 %v1418
    %v2034 = vunpack.c.l.b16 %v1419
    %v2035 = vunpack.c.l.b16 %v1420
    %v2036 = vunpack.c.l.b16 %v1421
    %v2037 = vunpack.c.l.b16 %v1422
    %v2038 = vunpack.c.l.b16 %v1423
    %v2039 = vunpack.c.l.b16 %v1424
    %v2040 = vunpack.c.l.b16 %v1425
    %v2041 = vunpack.c.l.b16 %v1426
    %v2042 = vunpack.c.l.b16 %v1427
    %v2043 = vunpack.c.l.b16 %v1428
    %v2044 = vunpack.c.l.b16 %v1429
    %v2045 = vunpack.c.l.b16 %v1430
    %v2046 = vunpack.c.l.b16 %v1431
    %v2047 = vunpack.c.l.b16 %v1432
    %v2048 = vunpack.c.l.b16 %v1433
    %v2049 = vunpack.c.l.b16 %v1434
    %v2050 = vunpack.c.l.b16 %v1435
    %v2051 = vunpack.c.l.b16 %v1436
    %v2052 = vunpack.c.l.b16 %v1437
    %v2053 = vunpack.c.l.b16 %v1438
    %v2054 = vunpack.c.l.b16 %v1439
    %v2055 = vunpack.c.l.b16 %v1440
    %v2056 = vunpack.c.l.b16 %v1441
    %v2057 = vunpack.c.l.b16 %v1442
    %v2058 = vunpack.c.l.b16 %v1443
    %v2059 = vunpack.c.l.b16 %v1444
    %v2060 = vunpack.c.l.b16 %v1445
    %v2061 = vunpack.c.l.b16 %v1446
    %v2062 = vunpack.c.l.b16 %v1447
    %v2063 = vunpack.c.l.b16 %v1448
    %v2064 = vunpack.c.l.b16 %v1449
    %v2065 = vunpack.c.l.b16 %v1450
    %v2066 = vunpack.c.l.b16 %v1451
    %v2067 = vunpack.c.l.b16 %v1452
    %v2068 = vunpack.c.l.b16 %v1453
    %v2069 = vunpack.c.l.b16 %v1454
    %v2070 = vunpack.c.l.b16 %v1455
    %v2071 = vunpack.c.l.b16 %v1456
    %v2072 = vunpack.c.l.b16 %v1457
    %v2073 = vunpack.c.l.b16 %v1458
    %v2074 = vunpack.c.l.b16 %v1459
    %v2075 = vunpack.c.l.b16 %v1460
    %v2076 = vunpack.c.l.b16 %v1461
    %v2077 = vunpack.c.l.b16 %v1462
    %v2078 = vunpack.c.l.b16 %v1463
    %v2079 = vunpack.c.l.b16 %v1464
    %v2080 = vunpack.c.l.b16 %v1465
    %v2081 = vunpack.c.l.b16 %v1466
    %v2082 = vunpack.c.l.b16 %v1467
    %v2083 = vunpack.c.l.b16 %v1468
    %v2084 = vunpack.c.l.b16 %v1469
    %v2085 = vunpack.c.l.b16 %v1470
    %v2086 = vunpack.c.l.b16 %v1471
    %v2087 = vunpack.c.l.b16 %v1472
    %v2088 = vunpack.c.l.b16 %v1473
    %v2089 = vunpack.c.l.b16 %v1474
    %v2090 = vunpack.c.l.b16 %v1475
    %v2091 = vunpack.c.l.b16 %v1476
    %v2092 = vunpack.c.l.b16 %v1477
    %v2093 = vunpack.c.l.b16 %v1478
    %v2094 = vunpack.c.l.b16 %v1479
    %v2095 = vunpack.c.l.b16 %v1480
    %v2096 = vunpack.c.l.b16 %v1481
    %v2097 = vunpack.c.l.b16 %v1482
    %v2098 = vunpack.c.l.b16 %v1483
    %v2099 = vunpack.c.l.b16 %v1484
    %v2100 = vunpack.c.l.b16 %v1485
    %v2101 = vunpack.c.l.b16 %v1486
    %v2102 = vunpack.c.l.b16 %v1487
    %v2103 = vunpack.c.l.b16 %v1488
    %v2104 = vunpack.c.l.b16 %v1489
    %v2105 = vunpack.c.l.b16 %v1490
    %v2106 = vunpack.c.l.b16 %v1491
    %v2107 = vunpack.c.l.b16 %v1492
    %v2108 = vunpack.c.l.b16 %v1493
    %v2109 = vunpack.c.l.b16 %v1494
    %v2110 = vunpack.c.l.b16 %v1495
    %v2111 = vunpack.c.l.b16 %v1496
    %v2112 = vunpack.c.l.b16 %v1497
    %v2113 = vunpack.c.l.b16 %v1498
    %v2114 = vunpack.c.l.b16 %v1499
    %v2115 = vunpack.c.l.b16 %v1500
    %v2116 = vunpack.c.l.b16 %v1501
    %v2117 = vunpack.c.l.b16 %v1502
    %v2118 = vunpack.c.l.b16 %v1503
    %v2119 = vunpack.c.l.b16 %v1504
    %v2120 = vunpack.c.l.b16 %v1505
    %v2121 = vunpack.c.l.b16 %v1506
    %v2122 = vunpack.c.l.b16 %v1507
    %v2123 = vunpack.c.l.b16 %v1508
    %v2124 = vunpack.c.l.b16 %v1509
    %v2125 = vunpack.c.l.b16 %v1510
    %v2126 = vunpack.c.l.b16 %v1511
    %v2127 = vunpack.c.l.b16 %v1512
    %v2128 = vunpack.c.l.b16 %v1513
    %v2129 = vunpack.c.l.b16 %v1514
    %v2130 = vunpack.c.l.b16 %v1515
    %v2131 = vunpack.c.l.b16 %v1516
    %v2132 = vunpack.c.l.b16 %v1517
    %v2133 = vunpack.c.l.b16 %v1518
    %v2134 = vunpack.c.l.b16 %v1519
    %v2135 = vpack.c.b16 %v1880, %v1879
    %v2136 = vpack.c.b16 %v1882, %v1881
    %v2137 = vpack.c.b16 %v1884, %v1883
    %v2138 = vpack.c.b16 %v1886, %v1885
    %v2139 = vpack.c.b16 %v1888, %v1887
    %v2140 = vpack.c.b16 %v1890, %v1889
    %v2141 = vpack.c.b16 %v1892, %v1891
    %v2142 = vpack.c.b16 %v1894, %v1893
    %v2143 = vpack.c.b16 %v1896, %v1895
    %v2144 = vpack.c.b16 %v1898, %v1897
    %v2145 = vpack.c.b16 %v1900, %v1899
    %v2146 = vpack.c.b16 %v1902, %v1901
    %v2147 = vpack.c.b16 %v1904, %v1903
    %v2148 = vpack.c.b16 %v1906, %v1905
    %v2149 = vpack.c.b16 %v1908, %v1907
    %v2150 = vpack.c.b16 %v1910, %v1909
    %v2151 = vpack.c.b16 %v1912, %v1911
    %v2152 = vpack.c.b16 %v1914, %v1913
    %v2153 = vpack.c.b16 %v1916, %v1915
    %v2154 = vpack.c.b16 %v1918, %v1917
    %v2155 = vpack.c.b16 %v1920, %v1919
    %v2156 = vpack.c.b16 %v1922, %v1921
    %v2157 = vpack.c.b16 %v1924, %v1923
    %v2158 = vpack.c.b16 %v1926, %v1925
    %v2159 = vpack.c.b16 %v1928, %v1927
    %v2160 = vpack.c.b16 %v1930, %v1929
    %v2161 = vpack.c.b16 %v1932, %v1931
    %v2162 = vpack.c.b16 %v1934, %v1933
    %v2163 = vpack.c.b16 %v1936, %v1935
    %v2164 = vpack.c.b16 %v1938, %v1937
    %v2165 = vpack.c.b16 %v1940, %v1939
    %v2166 = vpack.c.b16 %v1942, %v1941
    %v2167 = vpack.c.b16 %v1944, %v1943
    %v2168 = vpack.c.b16 %v1946, %v1945
    %v2169 = vpack.c.b16 %v1948, %v1947
    %v2170 = vpack.c.b16 %v1950, %v1949
    %v2171 = vpack.c.b16 %v1952, %v1951
    %v2172 = vpack.c.b16 %v1954, %v1953
    %v2173 = vpack.c.b16 %v1956, %v1955
    %v2174 = vpack.c.b16 %v1958, %v1957
    %v2175 = vpack.c.b16 %v1960, %v1959
    %v2176 = vpack.c.b16 %v1962, %v1961
    %v2177 = vpack.c.b16 %v1964, %v1963
    %v2178 = vpack.c.b16 %v1966, %v1965
    %v2179 = vpack.c.b16 %v1968, %v1967
    %v2180 = vpack.c.b16 %v1970, %v1969
    %v2181 = vpack.c.b16 %v1972, %v1971
    %v2182 = vpack.c.b16 %v1974, %v1973
    %v2183 = vpack.c.b16 %v1976, %v1975
    %v2184 = vpack.c.b16 %v1978, %v1977
    %v2185 = vpack.c.b16 %v1980, %v1979
    %v2186 = vpack.c.b16 %v1982, %v1981
    %v2187 = vpack.c.b16 %v1984, %v1983
    %v2188 = vpack.c.b16 %v1986, %v1985
    %v2189 = vpack.c.b16 %v1988, %v1987
    %v2190 = vpack.c.b16 %v1990, %v1989
    %v2191 = vpack.c.b16 %v1992, %v1991
    %v2192 = vpack.c.b16 %v1994, %v1993
    %v2193 = vpack.c.b16 %v1996, %v1995
    %v2194 = vpack.c.b16 %v1998, %v1997
    %v2195 = vpack.c.b16 %v2000, %v1999
    %v2196 = vpack.c.b16 %v2002, %v2001
    %v2197 = vpack.c.b16 %v2004, %v2003
    %v2198 = vpack.c.b16 %v2006, %v2005
    %v2199 = vpack.c.b16 %v2008, %v2007
    %v2200 = vpack.c.b16 %v2010, %v2009
    %v2201 = vpack.c.b16 %v2012, %v2011
    %v2202 = vpack.c.b16 %v2014, %v2013
    %v2203 = vpack.c.b16 %v2016, %v2015
    %v2204 = vpack.c.b16 %v2018, %v2017
    %v2205 = vpack.c.b16 %v2020, %v2019
    %v2206 = vpack.c.b16 %v2022, %v2021
    %v2207 = vpack.c.b16 %v2024, %v2023
    %v2208 = vpack.c.b16 %v2026, %v2025
    %v2209 = vpack.c.b16 %v2028, %v2027
    %v2210 = vpack.c.b16 %v2030, %v2029
    %v2211 = vpack.c.b16 %v2032, %v2031
    %v2212 = vpack.c.b16 %v2034, %v2033
    %v2213 = vpack.c.b16 %v2036, %v2035
    %v2214 = vpack.c.b16 %v2038, %v2037
    %v2215 = vpack.c.b16 %v2040, %v2039
    %v2216 = vpack.c.b16 %v2042, %v2041
    %v2217 = vpack.c.b16 %v2044, %v2043
    %v2218 = vpack.c.b16 %v2046, %v2045
    %v2219 = vpack.c.b16 %v2048, %v2047
    %v2220 = vpack.c.b16 %v2050, %v2049
    %v2221 = vpack.c.b16 %v2052, %v2051
    %v2222 = vpack.c.b16 %v2054, %v2053
    %v2223 = vpack.c.b16 %v2056, %v2055
    %v2224 = vpack.c.b16 %v2058, %v2057
    %v2225 = vpack.c.b16 %v2060, %v2059
    %v2226 = vpack.c.b16 %v2062, %v2061
    %v2227 = vpack.c.b16 %v2064, %v2063
    %v2228 = vpack.c.b16 %v2066, %v2065
    %v2229 = vpack.c.b16 %v2068, %v2067
    %v2230 = vpack.c.b16 %v2070, %v2069
    %v2231 = vpack.c.b16 %v2072, %v2071
    %v2232 = vpack.c.b16 %v2074, %v2073
    %v2233 = vpack.c.b16 %v2076, %v2075
    %v2234 = vpack.c.b16 %v2078, %v2077
    %v2235 = vpack.c.b16 %v2080, %v2079
    %v2236 = vpack.c.b16 %v2082, %v2081
    %v2237 = vpack.c.b16 %v2084, %v2083
    %v2238 = vpack.c.b16 %v2086, %v2085
    %v2239 = vpack.c.b16 %v2088, %v2087
    %v2240 = vpack.c.b16 %v2090, %v2089
    %v2241 = vpack.c.b16 %v2092, %v2091
    %v2242 = vpack.c.b16 %v2094, %v2093
    %v2243 = vpack.c.b16 %v2096, %v2095
    %v2244 = vpack.c.b16 %v2098, %v2097
    %v2245 = vpack.c.b16 %v2100, %v2099
    %v2246 = vpack.c.b16 %v2102, %v2101
    %v2247 = vpack.c.b16 %v2104, %v2103
    %v2248 = vpack.c.b16 %v2106, %v2105
    %v2249 = vpack.c.b16 %v2108, %v2107
    %v2250 = vpack.c.b16 %v2110, %v2109
    %v2251 = vpack.c.b16 %v2112, %v2111
    %v2252 = vpack.c.b16 %v2114, %v2113
    %v2253 = vpack.c.b16 %v2116, %v2115
    %v2254 = vpack.c.b16 %v2118, %v2117
    %v2255 = vpack.c.b16 %v2120, %v2119
    %v2256 = vpack.c.b16 %v2122, %v2121
    %v2257 = vpack.c.b16 %v2124, %v2123
    %v2258 = vpack.c.b16 %v2126, %v2125
    %v2259 = vpack.c.b16 %v2128, %v2127
    %v2260 = vpack.c.b16 %v2130, %v2129
    %v2261 = vpack.c.b16 %v2132, %v2131
    %v2262 = vpack.c.b16 %v2134, %v2133
    %2391 = vmatprep.subr.bf16.mxu0 0
    %2392 = vmatpush1.bf16.msra.mxu0 %v2142
    %2393 = vmatprep.subr.bf16.mxu0 0
    %2394 = vmatpush1.bf16.msra.mxu0 %v2141
    %2395 = vmatprep.subr.bf16.mxu0 0
    %2396 = vmatpush1.bf16.msra.mxu0 %v2140
    %2397 = vmatprep.subr.bf16.mxu0 0
    %2398 = vmatpush1.bf16.msra.mxu0 %v2139
    %2399 = vmatprep.subr.bf16.mxu0 0
    %2400 = vmatpush1.bf16.msra.mxu0 %v2138
    %2401 = vmatprep.subr.bf16.mxu0 0
    %2402 = vmatpush1.bf16.msra.mxu0 %v2137
    %2403 = vmatprep.subr.bf16.mxu0 0
    %2404 = vmatpush1.bf16.msra.mxu0 %v2136
    %2405 = vmatprep.subr.bf16.mxu0 0
    %2406 = vmatpush1.bf16.msra.mxu0 %v2135
    %2407 = vmatprep.subr.bf16.mxu0 0
    %2408 = vmatpush2.bf16.msra.mxu0 %v2150
    %2409 = vmatprep.subr.bf16.mxu0 0
    %2410 = vmatpush2.bf16.msra.mxu0 %v2149
    %2411 = vmatprep.subr.bf16.mxu0 0
    %2412 = vmatpush2.bf16.msra.mxu0 %v2148
    %2413 = vmatprep.subr.bf16.mxu0 0
    %2414 = vmatpush2.bf16.msra.mxu0 %v2147
    %2415 = vmatprep.subr.bf16.mxu0 0
    %2416 = vmatpush2.bf16.msra.mxu0 %v2146
    %2417 = vmatprep.subr.bf16.mxu0 0
    %2418 = vmatpush2.bf16.msra.mxu0 %v2145
    %2419 = vmatprep.subr.bf16.mxu0 0
    %2420 = vmatpush2.bf16.msra.mxu0 %v2144
    %2421 = vmatprep.subr.bf16.mxu0 0
    %2422 = vmatpush2.bf16.msra.mxu0 %v2143
    %2423 = vmatprep.mubr.bf16.mxu0 %v1551
    %2424 = vmatmul.mubr.bf16.gmra.mxu0 %v1543
    %v2425 = vpop.f32.mrf.mxu0
    %v2426 = vadd.f32 %v1525, %v2425
    %v2427 = vpop.f32.mrf.mxu0
    %v2428 = vpop.f32.mrf.mxu0
    %v2429 = vpop.f32.mrf.mxu0
    %2430 = vdwg.mxu0
    %2431 = vmatprep.subr.bf16.mxu0 0
    %2432 = vmatpush1.bf16.msra.mxu0 %v2158
    %2433 = vmatprep.subr.bf16.mxu0 0
    %2434 = vmatpush1.bf16.msra.mxu0 %v2157
    %2435 = vmatprep.subr.bf16.mxu0 0
    %2436 = vmatpush1.bf16.msra.mxu0 %v2156
    %2437 = vmatprep.subr.bf16.mxu0 0
    %2438 = vmatpush1.bf16.msra.mxu0 %v2155
    %2439 = vmatprep.subr.bf16.mxu0 0
    %2440 = vmatpush1.bf16.msra.mxu0 %v2154
    %2441 = vmatprep.subr.bf16.mxu0 0
    %2442 = vmatpush1.bf16.msra.mxu0 %v2153
    %2443 = vmatprep.subr.bf16.mxu0 0
    %2444 = vmatpush1.bf16.msra.mxu0 %v2152
    %2445 = vmatprep.subr.bf16.mxu0 0
    %2446 = vmatpush1.bf16.msra.mxu0 %v2151
    %2447 = vmatprep.subr.bf16.mxu0 0
    %2448 = vmatpush2.bf16.msra.mxu0 %v2166
    %2449 = vmatprep.subr.bf16.mxu0 0
    %2450 = vmatpush2.bf16.msra.mxu0 %v2165
    %2451 = vmatprep.subr.bf16.mxu0 0
    %2452 = vmatpush2.bf16.msra.mxu0 %v2164
    %2453 = vmatprep.subr.bf16.mxu0 0
    %2454 = vmatpush2.bf16.msra.mxu0 %v2163
    %2455 = vmatprep.subr.bf16.mxu0 0
    %2456 = vmatpush2.bf16.msra.mxu0 %v2162
    %2457 = vmatprep.subr.bf16.mxu0 0
    %2458 = vmatpush2.bf16.msra.mxu0 %v2161
    %2459 = vmatprep.subr.bf16.mxu0 0
    %2460 = vmatpush2.bf16.msra.mxu0 %v2160
    %2461 = vmatprep.subr.bf16.mxu0 0
    %2462 = vmatpush2.bf16.msra.mxu0 %v2159
    %2463 = vmatprep.mubr.bf16.mxu0 %v1552
    %2464 = vmatmul.mubr.bf16.gmra.mxu0 %v1550
    %v2465 = vpop.f32.mrf.mxu0
    %v2466 = vadd.f32 %v2426, %v2465
    %v2467 = vpop.f32.mrf.mxu0
    %v2468 = vpop.f32.mrf.mxu0
    %v2469 = vpop.f32.mrf.mxu0
    %2470 = vdwg.mxu0
    %2471 = vmatprep.subr.bf16.mxu0 0
    %2472 = vmatpush1.bf16.msra.mxu0 %v2174
    %2473 = vmatprep.subr.bf16.mxu0 0
    %2474 = vmatpush1.bf16.msra.mxu0 %v2173
    %2475 = vmatprep.subr.bf16.mxu0 0
    %2476 = vmatpush1.bf16.msra.mxu0 %v2172
    %2477 = vmatprep.subr.bf16.mxu0 0
    %2478 = vmatpush1.bf16.msra.mxu0 %v2171
    %2479 = vmatprep.subr.bf16.mxu0 0
    %2480 = vmatpush1.bf16.msra.mxu0 %v2170
    %2481 = vmatprep.subr.bf16.mxu0 0
    %2482 = vmatpush1.bf16.msra.mxu0 %v2169
    %2483 = vmatprep.subr.bf16.mxu0 0
    %2484 = vmatpush1.bf16.msra.mxu0 %v2168
    %2485 = vmatprep.subr.bf16.mxu0 0
    %2486 = vmatpush1.bf16.msra.mxu0 %v2167
    %2487 = vmatprep.subr.bf16.mxu0 0
    %2488 = vmatpush2.bf16.msra.mxu0 %v2182
    %2489 = vmatprep.subr.bf16.mxu0 0
    %2490 = vmatpush2.bf16.msra.mxu0 %v2181
    %2491 = vmatprep.subr.bf16.mxu0 0
    %2492 = vmatpush2.bf16.msra.mxu0 %v2180
    %2493 = vmatprep.subr.bf16.mxu0 0
    %2494 = vmatpush2.bf16.msra.mxu0 %v2179
    %2495 = vmatprep.subr.bf16.mxu0 0
    %2496 = vmatpush2.bf16.msra.mxu0 %v2178
    %2497 = vmatprep.subr.bf16.mxu0 0
    %2498 = vmatpush2.bf16.msra.mxu0 %v2177
    %2499 = vmatprep.subr.bf16.mxu0 0
    %2500 = vmatpush2.bf16.msra.mxu0 %v2176
    %2501 = vmatprep.subr.bf16.mxu0 0
    %2502 = vmatpush2.bf16.msra.mxu0 %v2175
    %2503 = vmatprep.mubr.bf16.mxu0 %v1569
    %2504 = vmatmul.mubr.bf16.gmra.mxu0 %v1561
    %v2505 = vpop.f32.mrf.mxu0
    %v2506 = vadd.f32 %v2466, %v2505
    %v2507 = vpop.f32.mrf.mxu0
    %v2508 = vpop.f32.mrf.mxu0
    %v2509 = vpop.f32.mrf.mxu0
    %2510 = vdwg.mxu0
    %2511 = vmatprep.subr.bf16.mxu0 0
    %2512 = vmatpush1.bf16.msra.mxu0 %v2190
    %2513 = vmatprep.subr.bf16.mxu0 0
    %2514 = vmatpush1.bf16.msra.mxu0 %v2189
    %2515 = vmatprep.subr.bf16.mxu0 0
    %2516 = vmatpush1.bf16.msra.mxu0 %v2188
    %2517 = vmatprep.subr.bf16.mxu0 0
    %2518 = vmatpush1.bf16.msra.mxu0 %v2187
    %2519 = vmatprep.subr.bf16.mxu0 0
    %2520 = vmatpush1.bf16.msra.mxu0 %v2186
    %2521 = vmatprep.subr.bf16.mxu0 0
    %2522 = vmatpush1.bf16.msra.mxu0 %v2185
    %2523 = vmatprep.subr.bf16.mxu0 0
    %2524 = vmatpush1.bf16.msra.mxu0 %v2184
    %2525 = vmatprep.subr.bf16.mxu0 0
    %2526 = vmatpush1.bf16.msra.mxu0 %v2183
    %2527 = vmatprep.subr.bf16.mxu0 0
    %2528 = vmatpush2.bf16.msra.mxu0 %v2198
    %2529 = vmatprep.subr.bf16.mxu0 0
    %2530 = vmatpush2.bf16.msra.mxu0 %v2197
    %2531 = vmatprep.subr.bf16.mxu0 0
    %2532 = vmatpush2.bf16.msra.mxu0 %v2196
    %2533 = vmatprep.subr.bf16.mxu0 0
    %2534 = vmatpush2.bf16.msra.mxu0 %v2195
    %2535 = vmatprep.subr.bf16.mxu0 0
    %2536 = vmatpush2.bf16.msra.mxu0 %v2194
    %2537 = vmatprep.subr.bf16.mxu0 0
    %2538 = vmatpush2.bf16.msra.mxu0 %v2193
    %2539 = vmatprep.subr.bf16.mxu0 0
    %2540 = vmatpush2.bf16.msra.mxu0 %v2192
    %2541 = vmatprep.subr.bf16.mxu0 0
    %2542 = vmatpush2.bf16.msra.mxu0 %v2191
    %2543 = vmatprep.mubr.bf16.mxu0 %v1570
    %2544 = vmatmul.mubr.bf16.gmra.mxu0 %v1568
    %v2545 = vpop.f32.mrf.mxu0
    %v2546 = vadd.f32 %v2506, %v2545
    %v2547 = vpop.f32.mrf.mxu0
    %v2548 = vpop.f32.mrf.mxu0
    %v2549 = vpop.f32.mrf.mxu0
    %2550 = vdwg.mxu0
    %2551 = vmatprep.subr.bf16.mxu0 0
    %2552 = vmatpush1.bf16.msra.mxu0 %v2206
    %2553 = vmatprep.subr.bf16.mxu0 0
    %2554 = vmatpush1.bf16.msra.mxu0 %v2205
    %2555 = vmatprep.subr.bf16.mxu0 0
    %2556 = vmatpush1.bf16.msra.mxu0 %v2204
    %2557 = vmatprep.subr.bf16.mxu0 0
    %2558 = vmatpush1.bf16.msra.mxu0 %v2203
    %2559 = vmatprep.subr.bf16.mxu0 0
    %2560 = vmatpush1.bf16.msra.mxu0 %v2202
    %2561 = vmatprep.subr.bf16.mxu0 0
    %2562 = vmatpush1.bf16.msra.mxu0 %v2201
    %2563 = vmatprep.subr.bf16.mxu0 0
    %2564 = vmatpush1.bf16.msra.mxu0 %v2200
    %2565 = vmatprep.subr.bf16.mxu0 0
    %2566 = vmatpush1.bf16.msra.mxu0 %v2199
    %2567 = vmatprep.subr.bf16.mxu0 0
    %2568 = vmatpush2.bf16.msra.mxu0 %v2214
    %2569 = vmatprep.subr.bf16.mxu0 0
    %2570 = vmatpush2.bf16.msra.mxu0 %v2213
    %2571 = vmatprep.subr.bf16.mxu0 0
    %2572 = vmatpush2.bf16.msra.mxu0 %v2212
    %2573 = vmatprep.subr.bf16.mxu0 0
    %2574 = vmatpush2.bf16.msra.mxu0 %v2211
    %2575 = vmatprep.subr.bf16.mxu0 0
    %2576 = vmatpush2.bf16.msra.mxu0 %v2210
    %2577 = vmatprep.subr.bf16.mxu0 0
    %2578 = vmatpush2.bf16.msra.mxu0 %v2209
    %2579 = vmatprep.subr.bf16.mxu0 0
    %2580 = vmatpush2.bf16.msra.mxu0 %v2208
    %2581 = vmatprep.subr.bf16.mxu0 0
    %2582 = vmatpush2.bf16.msra.mxu0 %v2207
    %2583 = vmatprep.mubr.bf16.mxu0 %v1587
    %2584 = vmatmul.mubr.bf16.gmra.mxu0 %v1579
    %v2585 = vpop.f32.mrf.mxu0
    %v2586 = vadd.f32 %v2546, %v2585
    %v2587 = vpop.f32.mrf.mxu0
    %v2588 = vpop.f32.mrf.mxu0
    %v2589 = vpop.f32.mrf.mxu0
    %2590 = vdwg.mxu0
    %2591 = vmatprep.subr.bf16.mxu0 0
    %2592 = vmatpush1.bf16.msra.mxu0 %v2222
    %2593 = vmatprep.subr.bf16.mxu0 0
    %2594 = vmatpush1.bf16.msra.mxu0 %v2221
    %2595 = vmatprep.subr.bf16.mxu0 0
    %2596 = vmatpush1.bf16.msra.mxu0 %v2220
    %2597 = vmatprep.subr.bf16.mxu0 0
    %2598 = vmatpush1.bf16.msra.mxu0 %v2219
    %2599 = vmatprep.subr.bf16.mxu0 0
    %2600 = vmatpush1.bf16.msra.mxu0 %v2218
    %2601 = vmatprep.subr.bf16.mxu0 0
    %2602 = vmatpush1.bf16.msra.mxu0 %v2217
    %2603 = vmatprep.subr.bf16.mxu0 0
    %2604 = vmatpush1.bf16.msra.mxu0 %v2216
    %2605 = vmatprep.subr.bf16.mxu0 0
    %2606 = vmatpush1.bf16.msra.mxu0 %v2215
    %2607 = vmatprep.subr.bf16.mxu0 0
    %2608 = vmatpush2.bf16.msra.mxu0 %v2230
    %2609 = vmatprep.subr.bf16.mxu0 0
    %2610 = vmatpush2.bf16.msra.mxu0 %v2229
    %2611 = vmatprep.subr.bf16.mxu0 0
    %2612 = vmatpush2.bf16.msra.mxu0 %v2228
    %2613 = vmatprep.subr.bf16.mxu0 0
    %2614 = vmatpush2.bf16.msra.mxu0 %v2227
    %2615 = vmatprep.subr.bf16.mxu0 0
    %2616 = vmatpush2.bf16.msra.mxu0 %v2226
    %2617 = vmatprep.subr.bf16.mxu0 0
    %2618 = vmatpush2.bf16.msra.mxu0 %v2225
    %2619 = vmatprep.subr.bf16.mxu0 0
    %2620 = vmatpush2.bf16.msra.mxu0 %v2224
    %2621 = vmatprep.subr.bf16.mxu0 0
    %2622 = vmatpush2.bf16.msra.mxu0 %v2223
    %2623 = vmatprep.mubr.bf16.mxu0 %v1588
    %2624 = vmatmul.mubr.bf16.gmra.mxu0 %v1586
    %v2625 = vpop.f32.mrf.mxu0
    %v2626 = vadd.f32 %v2586, %v2625
    %v2627 = vpop.f32.mrf.mxu0
    %v2628 = vpop.f32.mrf.mxu0
    %v2629 = vpop.f32.mrf.mxu0
    %2630 = vdwg.mxu0
    %2631 = vmatprep.subr.bf16.mxu0 0
    %2632 = vmatpush1.bf16.msra.mxu0 %v2238
    %2633 = vmatprep.subr.bf16.mxu0 0
    %2634 = vmatpush1.bf16.msra.mxu0 %v2237
    %2635 = vmatprep.subr.bf16.mxu0 0
    %2636 = vmatpush1.bf16.msra.mxu0 %v2236
    %2637 = vmatprep.subr.bf16.mxu0 0
    %2638 = vmatpush1.bf16.msra.mxu0 %v2235
    %2639 = vmatprep.subr.bf16.mxu0 0
    %2640 = vmatpush1.bf16.msra.mxu0 %v2234
    %2641 = vmatprep.subr.bf16.mxu0 0
    %2642 = vmatpush1.bf16.msra.mxu0 %v2233
    %2643 = vmatprep.subr.bf16.mxu0 0
    %2644 = vmatpush1.bf16.msra.mxu0 %v2232
    %2645 = vmatprep.subr.bf16.mxu0 0
    %2646 = vmatpush1.bf16.msra.mxu0 %v2231
    %2647 = vmatprep.subr.bf16.mxu0 0
    %2648 = vmatpush2.bf16.msra.mxu0 %v2246
    %2649 = vmatprep.subr.bf16.mxu0 0
    %2650 = vmatpush2.bf16.msra.mxu0 %v2245
    %2651 = vmatprep.subr.bf16.mxu0 0
    %2652 = vmatpush2.bf16.msra.mxu0 %v2244
    %2653 = vmatprep.subr.bf16.mxu0 0
    %2654 = vmatpush2.bf16.msra.mxu0 %v2243
    %2655 = vmatprep.subr.bf16.mxu0 0
    %2656 = vmatpush2.bf16.msra.mxu0 %v2242
    %2657 = vmatprep.subr.bf16.mxu0 0
    %2658 = vmatpush2.bf16.msra.mxu0 %v2241
    %2659 = vmatprep.subr.bf16.mxu0 0
    %2660 = vmatpush2.bf16.msra.mxu0 %v2240
    %2661 = vmatprep.subr.bf16.mxu0 0
    %2662 = vmatpush2.bf16.msra.mxu0 %v2239
    %2663 = vmatprep.mubr.bf16.mxu0 %v1605
    %2664 = vmatmul.mubr.bf16.gmra.mxu0 %v1597
    %v2665 = vpop.f32.mrf.mxu0
    %v2666 = vadd.f32 %v2626, %v2665
    %v2667 = vpop.f32.mrf.mxu0
    %v2668 = vpop.f32.mrf.mxu0
    %v2669 = vpop.f32.mrf.mxu0
    %2670 = vdwg.mxu0
    %2671 = vmatprep.subr.bf16.mxu0 0
    %2672 = vmatpush1.bf16.msra.mxu0 %v2254
    %2673 = vmatprep.subr.bf16.mxu0 0
    %2674 = vmatpush1.bf16.msra.mxu0 %v2253
    %2675 = vmatprep.subr.bf16.mxu0 0
    %2676 = vmatpush1.bf16.msra.mxu0 %v2252
    %2677 = vmatprep.subr.bf16.mxu0 0
    %2678 = vmatpush1.bf16.msra.mxu0 %v2251
    %2679 = vmatprep.subr.bf16.mxu0 0
    %2680 = vmatpush1.bf16.msra.mxu0 %v2250
    %2681 = vmatprep.subr.bf16.mxu0 0
    %2682 = vmatpush1.bf16.msra.mxu0 %v2249
    %2683 = vmatprep.subr.bf16.mxu0 0
    %2684 = vmatpush1.bf16.msra.mxu0 %v2248
    %2685 = vmatprep.subr.bf16.mxu0 0
    %2686 = vmatpush1.bf16.msra.mxu0 %v2247
    %2687 = vmatprep.subr.bf16.mxu0 0
    %2688 = vmatpush2.bf16.msra.mxu0 %v2262
    %2689 = vmatprep.subr.bf16.mxu0 0
    %2690 = vmatpush2.bf16.msra.mxu0 %v2261
    %2691 = vmatprep.subr.bf16.mxu0 0
    %2692 = vmatpush2.bf16.msra.mxu0 %v2260
    %2693 = vmatprep.subr.bf16.mxu0 0
    %2694 = vmatpush2.bf16.msra.mxu0 %v2259
    %2695 = vmatprep.subr.bf16.mxu0 0
    %2696 = vmatpush2.bf16.msra.mxu0 %v2258
    %2697 = vmatprep.subr.bf16.mxu0 0
    %2698 = vmatpush2.bf16.msra.mxu0 %v2257
    %2699 = vmatprep.subr.bf16.mxu0 0
    %2700 = vmatpush2.bf16.msra.mxu0 %v2256
    %2701 = vmatprep.subr.bf16.mxu0 0
    %2702 = vmatpush2.bf16.msra.mxu0 %v2255
    %2703 = vmatprep.mubr.bf16.mxu0 %v1606
    %2704 = vmatmul.mubr.bf16.gmra.mxu0 %v1604
    %v2705 = vpop.f32.mrf.mxu0
    %v2706 = vadd.f32 %v2666, %v2705
    %v2707 = vpop.f32.mrf.mxu0
    %v2708 = vpop.f32.mrf.mxu0
    %v2709 = vpop.f32.mrf.mxu0
    %2710 = vdwg.mxu0
    %v2712 = vcombine.high %v2706, %v2706
    %vm2714 = vcmask 257024
    %2715 = vst.msk [vmem:[#allocation5] sm:$0xf] %vm2714, %v2706
    %2716 = vst.msk [vmem:[#allocation5 + $0x4] sm:$0xf] %vm2714, %v2712
    // Predicated region
    $region26: #{tpu_custom_call.1} parent=1 // pred_check
      _
    $region27: #{tpu_custom_call.1} parent=1 // pred_check_branch
      %2718 = sbr.rel (0) target = $region29
    $region28: #{tpu_custom_call.1} parent=1 // pred_region
      %s2720 = ssub.s32 256, 256
      %2721 = vsyncadd [#allocation4], %s2720
      %s2722 = sshll.u32 [#allocation3], 4
      %s2723 = int_to_ptr.vmem [resolvable:$true] %s2722
      %2728 = dma.vmem_to_hbm [thread:$0]  %s2723, 256, %s6, [#allocation4], 32, 32, 2
    $region29: #{tpu_custom_call.1} parent=1 // pred_fallthru
      _
    // Predicated region
    $region30: #{tpu_custom_call.1} parent=1 // pred_check
      _
    $region31: #{tpu_custom_call.1} parent=1 // pred_check_branch
      %2730 = sbr.rel (0) target = $region33
    $region32: #{tpu_custom_call.1} parent=1 // pred_region
      %s2732 = ssub.s32 128, 128
      %2733 = vsyncadd [#allocation6], %s2732
      %s2734 = sshll.u32 [#allocation5], 4
      %s2735 = int_to_ptr.vmem [resolvable:$true] %s2734
      %2740 = dma.vmem_to_hbm [thread:$0]  %s2735, 128, %s7, [#allocation6], 64, 64, 4
    $region33: #{tpu_custom_call.1} parent=1 // pred_fallthru
      _
    // Predicated region
    $region34: #{tpu_custom_call.1} parent=1 // pred_check
      _
    $region35: #{tpu_custom_call.1} parent=1 // pred_check_branch
      %2742 = sbr.rel (0) target = $region37
    $region36: #{tpu_custom_call.1} parent=1 // pred_region
      %2743 = dma.done [#allocation4], 256
    $region37: #{tpu_custom_call.1} parent=1 // pred_fallthru
      _
    // Predicated region
    $region38: #{tpu_custom_call.1} parent=1 // pred_check
      _
    $region39: #{tpu_custom_call.1} parent=1 // pred_check_branch
      %2745 = sbr.rel (0) target = $region41
    $region40: #{tpu_custom_call.1} parent=1 // pred_region
      %2746 = dma.done [#allocation6], 128
    $region41: #{tpu_custom_call.1} parent=1 // pred_fallthru
      _
    %2747 = vsyncpa [#allocation4], 1
    %2748 = vsyncpa [#allocation6], 1

</llo_original>
